<compile_context>
chip_gen: v5e
topology: v5e:2x2
jax: 0.10.0
libtpu: 0.0.40
codegen_flags: <defaults>
</compile_context>

<pallas_src>
import jax
import jax.numpy as jnp
from jax.experimental import pallas as pl
from jax.experimental.pallas import tpu as pltpu


# ----------------------------- configuration --------------------------------
BATCH = 2
SEQ = 8
HIDDEN = 32            # small stand-in for 768
NUM_HEADS = 2
HEAD_DIM = HIDDEN // NUM_HEADS
INTERMEDIATE = 4 * HIDDEN
NUM_LAYERS = 2
VOCAB = 64
MAX_POS = 16
NUM_ZM = 200           # charges
NUM_FT = 183           # law articles
ZM_PAD = 256           # class count padded -> slab width 2*256 = 512 lanes
FT_PAD = 192           # class count padded -> slab width 2*192 = 384 lanes
LN_EPS = 1e-12
TOKENS = BATCH * SEQ


# ------------------------------- kernels -------------------------------------
def _layernorm(x, g, b, eps=LN_EPS):
    mean = jnp.mean(x, axis=-1, keepdims=True)
    xc = x - mean
    var = jnp.mean(xc * xc, axis=-1, keepdims=True)
    return xc * jax.lax.rsqrt(var + eps) * g + b


def _gelu_tanh(x):
    return 0.5 * x * (1.0 + jnp.tanh(0.7978845608028654 *
                                     (x + 0.044715 * x * x * x)))


def _encoder_kernel(x_emb_ref, emb_g_ref, emb_b_ref,
                    wqkv_ref, bqkv_ref, wo_ref, bo_ref,
                    ln1_g_ref, ln1_b_ref,
                    wi_ref, bi_ref, wo2_ref, bo2_ref,
                    ln2_g_ref, ln2_b_ref,
                    h_ref, ctx_ref):
    """One full transformer layer per grid step; h carried in the resident output."""
    # Layer 0: initialize carried hidden state = LayerNorm(embeddings).
    @pl.when(pl.program_id(0) == 0)
    def _():
        h_ref[...] = _layernorm(x_emb_ref[...], emb_g_ref[...], emb_b_ref[...])

    h = h_ref[...]                                            # [T, H]

    # Fused QKV projection: one matmul over [T, H] x [H, 3H].
    qkv = jnp.dot(h, wqkv_ref[...], preferred_element_type=jnp.float32)
    qkv = qkv + bqkv_ref[...]
    scale = 1.0 / (HEAD_DIM ** 0.5)
    q = qkv[:, :HIDDEN] * scale          # fold 1/sqrt(Dh) into q ([T,H] mul)
    k = qkv[:, HIDDEN:2 * HIDDEN]
    v = qkv[:, 2 * HIDDEN:]

    # Multi-head self-attention; static unrolled loop over (batch, head).
    # TODO(synk): no attention_mask (reference forward passes input ids only).
    for b in range(BATCH):
        r0 = b * SEQ
        for hh in range(NUM_HEADS):
            c0 = hh * HEAD_DIM
            qb = q[r0:r0 + SEQ, c0:c0 + HEAD_DIM]
            kb = k[r0:r0 + SEQ, c0:c0 + HEAD_DIM]
            vb = v[r0:r0 + SEQ, c0:c0 + HEAD_DIM]
            s = jax.lax.dot_general(qb, kb, (((1,), (1,)), ((), ())),
                                    preferred_element_type=jnp.float32)
            m = jnp.max(s, axis=-1, keepdims=True)
            p = jnp.exp(s - m)
            p = p * pl.reciprocal(jnp.sum(p, axis=-1, keepdims=True), approx=True)
            ctx_ref[r0:r0 + SEQ, c0:c0 + HEAD_DIM] = jnp.dot(
                p, vb, preferred_element_type=jnp.float32)

    # Attention output projection + residual + LN (fused).
    attn_out = jnp.dot(ctx_ref[...], wo_ref[...],
                       preferred_element_type=jnp.float32) + bo_ref[...]
    h1 = _layernorm(attn_out + h, ln1_g_ref[...], ln1_b_ref[...])

    # FFN + residual + LN (fused).
    inter = jnp.dot(h1, wi_ref[...], preferred_element_type=jnp.float32)
    inter = _gelu_tanh(inter + bi_ref[...])
    ffn = jnp.dot(inter, wo2_ref[...], preferred_element_type=jnp.float32)
    ffn = ffn + bo2_ref[...]
    h_ref[...] = _layernorm(ffn + h1, ln2_g_ref[...], ln2_b_ref[...])


def _head_loss_kernel(cls_ref, pw_ref, pb_ref,
                      zmw_ref, zmb_ref, ftw_ref, ftb_ref,
                      zml_ref, ftl_ref,
                      zm_slab_ref, ft_slab_ref, loss_ref):
    """Pooler + LJPredictor heads + both MultiLabelSoftmaxLoss reductions."""
    pooled = jnp.tanh(jnp.dot(cls_ref[...], pw_ref[...],
                              preferred_element_type=jnp.float32) + pb_ref[...])

    # Lane-dense logit slabs: [l0 block | l1 block] (padded class counts).
    zm_slab = jnp.dot(pooled, zmw_ref[...],
                      preferred_element_type=jnp.float32) + zmb_ref[...]
    ft_slab = jnp.dot(pooled, ftw_ref[...],
                      preferred_element_type=jnp.float32) + ftb_ref[...]
    zm_slab_ref[...] = zm_slab
    ft_slab_ref[...] = ft_slab

    def task_loss(slab, labels, cpad, c):
        l0 = slab[:, :cpad]
        l1 = slab[:, cpad:]
        m = jnp.maximum(l0, l1)
        lse = m + jnp.log(jnp.exp(l0 - m) + jnp.exp(l1 - m))
        picked = jnp.where(labels == 1, l1, l0)
        ce = lse - picked                                   # [B, Cpad]
        col = jax.lax.broadcasted_iota(jnp.int32, ce.shape, 1)
        ce = jnp.where(col < c, ce, 0.0)                    # mask padded classes
        return jnp.sum(ce) * (1.0 / BATCH)                  # sum_c mean_b CE

    loss = (task_loss(ft_slab, ftl_ref[...], FT_PAD, NUM_FT) +
            task_loss(zm_slab, zml_ref[...], ZM_PAD, NUM_ZM))
    loss_ref[...] = jnp.reshape(loss, (1, 1))


# ----------------------------- pallas wrappers --------------------------------
def bert_encoder(x_emb, emb_g, emb_b, layers):
    L, H, I, T = NUM_LAYERS, HIDDEN, INTERMEDIATE, TOKENS

    def rep(shape):           # layer-independent input (stays resident)
        return pl.BlockSpec(shape, lambda l: (0,) * len(shape))

    def per_layer(shape):     # stacked [L, ...] weight, leading dim squeezed
        return pl.BlockSpec((None,) + shape,
                            lambda l: (l,) + (0,) * len(shape))

    return pl.pallas_call(
        _encoder_kernel,
        out_shape=jax.ShapeDtypeStruct((T, H), jnp.float32),
        grid=(L,),
        in_specs=[
            rep((T, H)), rep((1, H)), rep((1, H)),
            per_layer((H, 3 * H)), per_layer((1, 3 * H)),
            per_layer((H, H)), per_layer((1, H)),
            per_layer((1, H)), per_layer((1, H)),
            per_layer((H, I)), per_layer((1, I)),
            per_layer((I, H)), per_layer((1, H)),
            per_layer((1, H)), per_layer((1, H)),
        ],
        out_specs=pl.BlockSpec((T, H), lambda l: (0, 0)),
        scratch_shapes=[pltpu.VMEM((T, H), jnp.float32)],
        compiler_params=pltpu.CompilerParams(
            dimension_semantics=("arbitrary",)),
    )(x_emb, emb_g, emb_b,
      layers["wqkv"], layers["bqkv"], layers["wo"], layers["bo"],
      layers["ln1_g"], layers["ln1_b"],
      layers["wi"], layers["bi"], layers["wo2"], layers["bo2"],
      layers["ln2_g"], layers["ln2_b"])


def head_and_loss(cls, params, zm_lab_pad, ft_lab_pad):
    B, H = cls.shape
    full = lambda shape: pl.BlockSpec(shape, lambda i: (0,) * len(shape))
    return pl.pallas_call(
        _head_loss_kernel,
        out_shape=(
            jax.ShapeDtypeStruct((B, 2 * ZM_PAD), jnp.float32),
            jax.ShapeDtypeStruct((B, 2 * FT_PAD), jnp.float32),
            jax.ShapeDtypeStruct((1, 1), jnp.float32),
        ),
        grid=(1,),
        in_specs=[
            full((B, H)),
            full((H, H)), full((1, H)),
            full((H, 2 * ZM_PAD)), full((1, 2 * ZM_PAD)),
            full((H, 2 * FT_PAD)), full((1, 2 * FT_PAD)),
            full((B, ZM_PAD)), full((B, FT_PAD)),
        ],
        out_specs=(
            full((B, 2 * ZM_PAD)),
            full((B, 2 * FT_PAD)),
            full((1, 1)),
        ),
    )(cls, params["pool_w"], params["pool_b"],
      params["zm_w"], params["zm_b"], params["ft_w"], params["ft_b"],
      zm_lab_pad, ft_lab_pad)


# ---------------------------- plain-JAX glue ----------------------------------
def multi_label_accuracy_from_slab(slab, labels, cpad, c):
    """Per-class TP/FN/FP/TN counts.  softmax(p1) >= 0.5  <=>  l1 >= l0."""
    l0 = slab[:, :c]
    l1 = slab[:, cpad:cpad + c]
    pred = (l1 >= l0).astype(jnp.int32)
    lab = labels.astype(jnp.int32)
    return {
        "TP": jnp.sum(lab * pred, axis=0),
        "FN": jnp.sum(lab * (1 - pred), axis=0),
        "FP": jnp.sum((1 - lab) * pred, axis=0),
        "TN": jnp.sum((1 - lab) * (1 - pred), axis=0),
    }


# ----------------------------- parameters -------------------------------------
def init_params(key):
    keys = iter(jax.random.split(key, 64))
    L, H, I = NUM_LAYERS, HIDDEN, INTERMEDIATE

    def nrm(shape, scale=0.02):
        return scale * jax.random.normal(next(keys), shape, dtype=jnp.float32)

    layers = {
        "wqkv": nrm((L, H, 3 * H)), "bqkv": jnp.zeros((L, 1, 3 * H), jnp.float32),
        "wo": nrm((L, H, H)), "bo": jnp.zeros((L, 1, H), jnp.float32),
        "ln1_g": jnp.ones((L, 1, H), jnp.float32),
        "ln1_b": jnp.zeros((L, 1, H), jnp.float32),
        "wi": nrm((L, H, I)), "bi": jnp.zeros((L, 1, I), jnp.float32),
        "wo2": nrm((L, I, H)), "bo2": jnp.zeros((L, 1, H), jnp.float32),
        "ln2_g": jnp.ones((L, 1, H), jnp.float32),
        "ln2_b": jnp.zeros((L, 1, H), jnp.float32),
    }

    def head(c, cpad):
        # Contiguous-halves layout: columns [0:cpad]=class-0, [cpad:2*cpad]=class-1,
        # padded columns are zero weight/bias (masked out in the loss kernel).
        w = jnp.zeros((H, 2 * cpad), jnp.float32)
        w = w.at[:, :c].set(nrm((H, c)))
        w = w.at[:, cpad:cpad + c].set(nrm((H, c)))
        b = jnp.zeros((1, 2 * cpad), jnp.float32)
        return w, b

    zm_w, zm_b = head(NUM_ZM, ZM_PAD)
    ft_w, ft_b = head(NUM_FT, FT_PAD)

    return {
        "word_emb": nrm((VOCAB, H)),
        "pos_emb": nrm((MAX_POS, H)),
        "type_emb": nrm((2, H)),
        "emb_ln_g": jnp.ones((1, H), jnp.float32),
        "emb_ln_b": jnp.zeros((1, H), jnp.float32),
        "layers": layers,
        "pool_w": nrm((H, H)), "pool_b": jnp.zeros((1, H), jnp.float32),
        "zm_w": zm_w, "zm_b": zm_b,
        "ft_w": ft_w, "ft_b": ft_b,
    }


# ------------------------------- forward --------------------------------------
def ljp_bert_forward(params, input_ids, ft_labels, zm_labels):
    # --- BERT embeddings (gathers are glue; LN is fused into the encoder kernel) ---
    we = params["word_emb"][input_ids]                        # [B, S, H]
    pe = params["pos_emb"][:SEQ][None, :, :]                  # [1, S, H]
    te = params["type_emb"][0][None, None, :]                 # token_type_ids = 0
    x_emb = (we + pe + te).reshape(TOKENS, HIDDEN)

    # --- fused transformer encoder (one pallas_call, grid over layers) ---
    h = bert_encoder(x_emb, params["emb_ln_g"], params["emb_ln_b"],
                     params["layers"])                        # [B*S, H]

    # --- pooler + LJPredictor heads + losses (one fused pallas_call) ---
    cls = h.reshape(BATCH, SEQ, HIDDEN)[:, 0, :]              # [B, H]
    zm_lab_pad = jnp.zeros((BATCH, ZM_PAD), jnp.int32).at[:, :NUM_ZM].set(
        zm_labels.astype(jnp.int32))
    ft_lab_pad = jnp.zeros((BATCH, FT_PAD), jnp.int32).at[:, :NUM_FT].set(
        ft_labels.astype(jnp.int32))
    zm_slab, ft_slab, loss = head_and_loss(cls, params, zm_lab_pad, ft_lab_pad)
    loss = loss[0, 0]

    # --- reconstruct [B, C, 2] logits for the returned result dict (glue) ---
    zm_logits = jnp.stack([zm_slab[:, :NUM_ZM],
                           zm_slab[:, ZM_PAD:ZM_PAD + NUM_ZM]], axis=-1)
    ft_logits = jnp.stack([ft_slab[:, :NUM_FT],
                           ft_slab[:, FT_PAD:FT_PAD + NUM_FT]], axis=-1)
    result = {"zm": zm_logits, "ft": ft_logits}

    # --- accuracy bookkeeping (counting only; plain JAX glue on the slabs) ---
    acc_result = {
        "ft": multi_label_accuracy_from_slab(ft_slab, ft_labels, FT_PAD, NUM_FT),
        "zm": multi_label_accuracy_from_slab(zm_slab, zm_labels, ZM_PAD, NUM_ZM),
    }
    return {"output": result, "loss": loss, "acc_result": acc_result}


# --------------------------------- main ----------------------------------------
if __name__ == "__main__":
    key = jax.random.PRNGKey(0)
    k_params, k_ids, k_ft, k_zm = jax.random.split(key, 4)

    params = init_params(k_params)
    input_ids = jax.random.randint(k_ids, (BATCH, SEQ), 0, VOCAB, dtype=jnp.int32)
    ft_labels = jax.random.bernoulli(k_ft, 0.05, (BATCH, NUM_FT)).astype(jnp.int32)
    zm_labels = jax.random.bernoulli(k_zm, 0.05, (BATCH, NUM_ZM)).astype(jnp.int32)

    fwd = jax.jit(ljp_bert_forward)
    out = fwd(params, input_ids, ft_labels, zm_labels)
    out = jax.block_until_ready(out)

    assert out["output"]["zm"].shape == (BATCH, NUM_ZM, 2)
    assert out["output"]["ft"].shape == (BATCH, NUM_FT, 2)
    assert out["loss"].shape == ()
    assert out["acc_result"]["ft"]["TP"].shape == (NUM_FT,)
    assert out["acc_result"]["zm"]["TP"].shape == (NUM_ZM,)
    assert bool(jnp.isfinite(out["loss"]))
    print("KERNEL_OK")
</pallas_src>

<mosaic_0001>
module attributes {stable_mosaic.version = 11 : i64} {
  func.func @_encoder_kernel(%arg0: i32, %arg1: memref<16x32xf32, #tpu.memory_space<vmem>>, %arg2: memref<1x32xf32, #tpu.memory_space<vmem>>, %arg3: memref<1x32xf32, #tpu.memory_space<vmem>>, %arg4: memref<1x32x96xf32, #tpu.memory_space<vmem>>, %arg5: memref<1x1x96xf32, #tpu.memory_space<vmem>>, %arg6: memref<1x32x32xf32, #tpu.memory_space<vmem>>, %arg7: memref<1x1x32xf32, #tpu.memory_space<vmem>>, %arg8: memref<1x1x32xf32, #tpu.memory_space<vmem>>, %arg9: memref<1x1x32xf32, #tpu.memory_space<vmem>>, %arg10: memref<1x32x128xf32, #tpu.memory_space<vmem>>, %arg11: memref<1x1x128xf32, #tpu.memory_space<vmem>>, %arg12: memref<1x128x32xf32, #tpu.memory_space<vmem>>, %arg13: memref<1x1x32xf32, #tpu.memory_space<vmem>>, %arg14: memref<1x1x32xf32, #tpu.memory_space<vmem>>, %arg15: memref<1x1x32xf32, #tpu.memory_space<vmem>>, %arg16: memref<16x32xf32, #tpu.memory_space<vmem>>, %arg17: memref<16x32xf32, #tpu.memory_space<vmem>>) attributes {dimension_semantics = [#tpu.dimension_semantics<arbitrary>], iteration_bounds = array<i64: 2>, scalar_prefetch = 0 : i64, scratch_operands = 1 : i64, tpu.core_type = #tpu.core_type<tc>, window_params = [{pipeline_mode = #tpu.pipeline_mode<synchronous>, transform_indices = @transform_0, window_bounds = array<i64: 16, 32>}, {pipeline_mode = #tpu.pipeline_mode<synchronous>, transform_indices = @transform_1, window_bounds = array<i64: 1, 32>}, {pipeline_mode = #tpu.pipeline_mode<synchronous>, transform_indices = @transform_2, window_bounds = array<i64: 1, 32>}, {transform_indices = @transform_3, window_bounds = array<i64: 1, 32, 96>}, {transform_indices = @transform_4, window_bounds = array<i64: 1, 1, 96>}, {transform_indices = @transform_5, window_bounds = array<i64: 1, 32, 32>}, {transform_indices = @transform_6, window_bounds = array<i64: 1, 1, 32>}, {transform_indices = @transform_7, window_bounds = array<i64: 1, 1, 32>}, {transform_indices = @transform_8, window_bounds = array<i64: 1, 1, 32>}, {transform_indices = @transform_9, window_bounds = array<i64: 1, 32, 128>}, {transform_indices = @transform_10, window_bounds = array<i64: 1, 1, 128>}, {transform_indices = @transform_11, window_bounds = array<i64: 1, 128, 32>}, {transform_indices = @transform_12, window_bounds = array<i64: 1, 1, 32>}, {transform_indices = @transform_13, window_bounds = array<i64: 1, 1, 32>}, {transform_indices = @transform_14, window_bounds = array<i64: 1, 1, 32>}, {pipeline_mode = #tpu.pipeline_mode<synchronous>, transform_indices = @transform_15, window_bounds = array<i64: 16, 32>}]} {
    %c0_i32 = arith.constant 0 : i32
    %0 = arith.cmpi eq, %arg0, %c0_i32 : i32
    %1 = arith.extui %0 : i1 to i32
    %c0_i32_0 = arith.constant 0 : i32
    %2 = arith.cmpi ne, %1, %c0_i32_0 : i32
    scf.if %2 {
      %c0_82 = arith.constant 0 : index
      %c0_83 = arith.constant 0 : index
      %166 = vector.load %arg1[%c0_82, %c0_83] : memref<16x32xf32, #tpu.memory_space<vmem>>, vector<16x32xf32>
      %c0_84 = arith.constant 0 : index
      %c0_85 = arith.constant 0 : index
      %167 = vector.load %arg2[%c0_84, %c0_85] : memref<1x32xf32, #tpu.memory_space<vmem>>, vector<1x32xf32>
      %c0_86 = arith.constant 0 : index
      %c0_87 = arith.constant 0 : index
      %168 = vector.load %arg3[%c0_86, %c0_87] : memref<1x32xf32, #tpu.memory_space<vmem>>, vector<1x32xf32>
      %cst_88 = arith.constant dense<0.000000e+00> : vector<16xf32>
      %169 = vector.multi_reduction <add>, %166, %cst_88 [1] : vector<16x32xf32> to vector<16xf32>
      %170 = vector.shape_cast %169 : vector<16xf32> to vector<16x1xf32>
      %cst_89 = arith.constant 3.200000e+01 : f32
      %171 = vector.broadcast %cst_89 : f32 to vector<16x1xf32>
      %172 = arith.divf %170, %171 : vector<16x1xf32>
      %173 = vector.broadcast %172 : vector<16x1xf32> to vector<16x32xf32>
      %174 = arith.subf %166, %173 : vector<16x32xf32>
      %175 = arith.mulf %174, %174 : vector<16x32xf32>
      %cst_90 = arith.constant dense<0.000000e+00> : vector<16xf32>
      %176 = vector.multi_reduction <add>, %175, %cst_90 [1] : vector<16x32xf32> to vector<16xf32>
      %177 = vector.shape_cast %176 : vector<16xf32> to vector<16x1xf32>
      %cst_91 = arith.constant 3.200000e+01 : f32
      %178 = vector.broadcast %cst_91 : f32 to vector<16x1xf32>
      %179 = arith.divf %177, %178 : vector<16x1xf32>
      %cst_92 = arith.constant 9.99999996E-13 : f32
      %180 = vector.broadcast %cst_92 : f32 to vector<16x1xf32>
      %181 = arith.addf %179, %180 : vector<16x1xf32>
      %182 = math.rsqrt %181 : vector<16x1xf32>
      %183 = vector.broadcast %182 : vector<16x1xf32> to vector<16x32xf32>
      %184 = arith.mulf %174, %183 : vector<16x32xf32>
      %185 = vector.broadcast %167 : vector<1x32xf32> to vector<16x32xf32>
      %186 = arith.mulf %184, %185 : vector<16x32xf32>
      %187 = vector.broadcast %168 : vector<1x32xf32> to vector<16x32xf32>
      %188 = arith.addf %186, %187 : vector<16x32xf32>
      %c0_93 = arith.constant 0 : index
      %c0_94 = arith.constant 0 : index
      %189 = vector.load %arg16[%c0_93, %c0_94] : memref<16x32xf32, #tpu.memory_space<vmem>>, vector<16x32xf32>
      tpu.vector_store %arg16[%c0_93, %c0_94], %188 {strides = array<i32>} : memref<16x32xf32, #tpu.memory_space<vmem>>, vector<16x32xf32>,
    } else {
    }
    %c0 = arith.constant 0 : index
    %c0_1 = arith.constant 0 : index
    %3 = vector.load %arg16[%c0, %c0_1] : memref<16x32xf32, #tpu.memory_space<vmem>>, vector<16x32xf32>
    %c0_2 = arith.constant 0 : index
    %c0_3 = arith.constant 0 : index
    %c0_4 = arith.constant 0 : index
    %4 = vector.load %arg4[%c0_2, %c0_3, %c0_4] : memref<1x32x96xf32, #tpu.memory_space<vmem>>, vector<1x32x96xf32>
    %5 = vector.shape_cast %4 : vector<1x32x96xf32> to vector<32x96xf32>
    %cst = arith.constant dense<0.000000e+00> : vector<16x96xf32>
    %6 = tpu.matmul %3, %5, %cst {dimension_numbers = #tpu.dot_dimension_numbers<[1], [0], [0], [1], [0, 0, 1, 1], [], []>} : vector<16x32xf32>, vector<32x96xf32>, vector<16x96xf32> -> vector<16x96xf32>
    %c0_5 = arith.constant 0 : index
    %c0_6 = arith.constant 0 : index
    %c0_7 = arith.constant 0 : index
    %7 = vector.load %arg5[%c0_5, %c0_6, %c0_7] : memref<1x1x96xf32, #tpu.memory_space<vmem>>, vector<1x1x96xf32>
    %8 = vector.shape_cast %7 : vector<1x1x96xf32> to vector<1x96xf32>
    %9 = vector.broadcast %8 : vector<1x96xf32> to vector<16x96xf32>
    %10 = arith.addf %6, %9 : vector<16x96xf32>
    %11 = vector.extract_strided_slice %10 {offsets = [0, 0], sizes = [16, 32], strides = [1, 1]} : vector<16x96xf32> to vector<16x32xf32>
    %cst_8 = arith.constant 2.500000e-01 : f32
    %12 = vector.broadcast %cst_8 : f32 to vector<16x32xf32>
    %13 = arith.mulf %11, %12 : vector<16x32xf32>
    %14 = vector.extract_strided_slice %10 {offsets = [0, 32], sizes = [16, 32], strides = [1, 1]} : vector<16x96xf32> to vector<16x32xf32>
    %15 = vector.extract_strided_slice %10 {offsets = [0, 64], sizes = [16, 32], strides = [1, 1]} : vector<16x96xf32> to vector<16x32xf32>
    %16 = vector.extract_strided_slice %13 {offsets = [0, 0], sizes = [8, 16], strides = [1, 1]} : vector<16x32xf32> to vector<8x16xf32>
    %17 = vector.extract_strided_slice %14 {offsets = [0, 0], sizes = [8, 16], strides = [1, 1]} : vector<16x32xf32> to vector<8x16xf32>
    %18 = vector.extract_strided_slice %15 {offsets = [0, 0], sizes = [8, 16], strides = [1, 1]} : vector<16x32xf32> to vector<8x16xf32>
    %cst_9 = arith.constant dense<0.000000e+00> : vector<8x8xf32>
    %19 = tpu.matmul %16, %17, %cst_9 {dimension_numbers = #tpu.dot_dimension_numbers<[1], [1], [0], [0], [0, 0, 1, 0], [], []>} : vector<8x16xf32>, vector<8x16xf32>, vector<8x8xf32> -> vector<8x8xf32>
    %cst_10 = arith.constant dense<0xFF800000> : vector<8xf32>
    %20 = vector.multi_reduction <maximumf>, %19, %cst_10 [1] : vector<8x8xf32> to vector<8xf32>
    %21 = vector.shape_cast %20 : vector<8xf32> to vector<8x1xf32>
    %22 = vector.broadcast %21 : vector<8x1xf32> to vector<8x8xf32>
    %23 = arith.subf %19, %22 : vector<8x8xf32>
    %24 = math.exp %23 : vector<8x8xf32>
    %cst_11 = arith.constant dense<0.000000e+00> : vector<8xf32>
    %25 = vector.multi_reduction <add>, %24, %cst_11 [1] : vector<8x8xf32> to vector<8xf32>
    %26 = vector.shape_cast %25 : vector<8xf32> to vector<8x1xf32>
    %27 = tpu.reciprocal %26 {approx = true} : vector<8x1xf32> -> vector<8x1xf32>
    %28 = vector.broadcast %27 : vector<8x1xf32> to vector<8x8xf32>
    %29 = arith.mulf %24, %28 : vector<8x8xf32>
    %cst_12 = arith.constant dense<0.000000e+00> : vector<8x16xf32>
    %30 = tpu.matmul %29, %18, %cst_12 {dimension_numbers = #tpu.dot_dimension_numbers<[1], [0], [0], [1], [0, 0, 1, 1], [], []>} : vector<8x8xf32>, vector<8x16xf32>, vector<8x16xf32> -> vector<8x16xf32>
    %c0_13 = arith.constant 0 : index
    %c0_14 = arith.constant 0 : index
    %31 = vector.load %arg17[%c0_13, %c0_14] : memref<16x32xf32, #tpu.memory_space<vmem>>, vector<8x16xf32>
    tpu.vector_store %arg17[%c0_13, %c0_14], %30 {strides = array<i32>} : memref<16x32xf32, #tpu.memory_space<vmem>>, vector<8x16xf32>,
    %32 = vector.extract_strided_slice %13 {offsets = [0, 16], sizes = [8, 16], strides = [1, 1]} : vector<16x32xf32> to vector<8x16xf32>
    %33 = vector.extract_strided_slice %14 {offsets = [0, 16], sizes = [8, 16], strides = [1, 1]} : vector<16x32xf32> to vector<8x16xf32>
    %34 = vector.extract_strided_slice %15 {offsets = [0, 16], sizes = [8, 16], strides = [1, 1]} : vector<16x32xf32> to vector<8x16xf32>
    %cst_15 = arith.constant dense<0.000000e+00> : vector<8x8xf32>
    %35 = tpu.matmul %32, %33, %cst_15 {dimension_numbers = #tpu.dot_dimension_numbers<[1], [1], [0], [0], [0, 0, 1, 0], [], []>} : vector<8x16xf32>, vector<8x16xf32>, vector<8x8xf32> -> vector<8x8xf32>
    %cst_16 = arith.constant dense<0xFF800000> : vector<8xf32>
    %36 = vector.multi_reduction <maximumf>, %35, %cst_16 [1] : vector<8x8xf32> to vector<8xf32>
    %37 = vector.shape_cast %36 : vector<8xf32> to vector<8x1xf32>
    %38 = vector.broadcast %37 : vector<8x1xf32> to vector<8x8xf32>
    %39 = arith.subf %35, %38 : vector<8x8xf32>
    %40 = math.exp %39 : vector<8x8xf32>
    %cst_17 = arith.constant dense<0.000000e+00> : vector<8xf32>
    %41 = vector.multi_reduction <add>, %40, %cst_17 [1] : vector<8x8xf32> to vector<8xf32>
    %42 = vector.shape_cast %41 : vector<8xf32> to vector<8x1xf32>
    %43 = tpu.reciprocal %42 {approx = true} : vector<8x1xf32> -> vector<8x1xf32>
    %44 = vector.broadcast %43 : vector<8x1xf32> to vector<8x8xf32>
    %45 = arith.mulf %40, %44 : vector<8x8xf32>
    %cst_18 = arith.constant dense<0.000000e+00> : vector<8x16xf32>
    %46 = tpu.matmul %45, %34, %cst_18 {dimension_numbers = #tpu.dot_dimension_numbers<[1], [0], [0], [1], [0, 0, 1, 1], [], []>} : vector<8x8xf32>, vector<8x16xf32>, vector<8x16xf32> -> vector<8x16xf32>
    %c0_19 = arith.constant 0 : index
    %c16 = arith.constant 16 : index
    %47 = vector.load %arg17[%c0_19, %c16] : memref<16x32xf32, #tpu.memory_space<vmem>>, vector<8x16xf32>
    tpu.vector_store %arg17[%c0_19, %c16], %46 {strides = array<i32>} : memref<16x32xf32, #tpu.memory_space<vmem>>, vector<8x16xf32>,
    %48 = vector.extract_strided_slice %13 {offsets = [8, 0], sizes = [8, 16], strides = [1, 1]} : vector<16x32xf32> to vector<8x16xf32>
    %49 = vector.extract_strided_slice %14 {offsets = [8, 0], sizes = [8, 16], strides = [1, 1]} : vector<16x32xf32> to vector<8x16xf32>
    %50 = vector.extract_strided_slice %15 {offsets = [8, 0], sizes = [8, 16], strides = [1, 1]} : vector<16x32xf32> to vector<8x16xf32>
    %cst_20 = arith.constant dense<0.000000e+00> : vector<8x8xf32>
    %51 = tpu.matmul %48, %49, %cst_20 {dimension_numbers = #tpu.dot_dimension_numbers<[1], [1], [0], [0], [0, 0, 1, 0], [], []>} : vector<8x16xf32>, vector<8x16xf32>, vector<8x8xf32> -> vector<8x8xf32>
    %cst_21 = arith.constant dense<0xFF800000> : vector<8xf32>
    %52 = vector.multi_reduction <maximumf>, %51, %cst_21 [1] : vector<8x8xf32> to vector<8xf32>
    %53 = vector.shape_cast %52 : vector<8xf32> to vector<8x1xf32>
    %54 = vector.broadcast %53 : vector<8x1xf32> to vector<8x8xf32>
    %55 = arith.subf %51, %54 : vector<8x8xf32>
    %56 = math.exp %55 : vector<8x8xf32>
    %cst_22 = arith.constant dense<0.000000e+00> : vector<8xf32>
    %57 = vector.multi_reduction <add>, %56, %cst_22 [1] : vector<8x8xf32> to vector<8xf32>
    %58 = vector.shape_cast %57 : vector<8xf32> to vector<8x1xf32>
    %59 = tpu.reciprocal %58 {approx = true} : vector<8x1xf32> -> vector<8x1xf32>
    %60 = vector.broadcast %59 : vector<8x1xf32> to vector<8x8xf32>
    %61 = arith.mulf %56, %60 : vector<8x8xf32>
    %cst_23 = arith.constant dense<0.000000e+00> : vector<8x16xf32>
    %62 = tpu.matmul %61, %50, %cst_23 {dimension_numbers = #tpu.dot_dimension_numbers<[1], [0], [0], [1], [0, 0, 1, 1], [], []>} : vector<8x8xf32>, vector<8x16xf32>, vector<8x16xf32> -> vector<8x16xf32>
    %c8 = arith.constant 8 : index
    %c0_24 = arith.constant 0 : index
    %63 = vector.load %arg17[%c8, %c0_24] : memref<16x32xf32, #tpu.memory_space<vmem>>, vector<8x16xf32>
    tpu.vector_store %arg17[%c8, %c0_24], %62 {strides = array<i32>} : memref<16x32xf32, #tpu.memory_space<vmem>>, vector<8x16xf32>,
    %64 = vector.extract_strided_slice %13 {offsets = [8, 16], sizes = [8, 16], strides = [1, 1]} : vector<16x32xf32> to vector<8x16xf32>
    %65 = vector.extract_strided_slice %14 {offsets = [8, 16], sizes = [8, 16], strides = [1, 1]} : vector<16x32xf32> to vector<8x16xf32>
    %66 = vector.extract_strided_slice %15 {offsets = [8, 16], sizes = [8, 16], strides = [1, 1]} : vector<16x32xf32> to vector<8x16xf32>
    %cst_25 = arith.constant dense<0.000000e+00> : vector<8x8xf32>
    %67 = tpu.matmul %64, %65, %cst_25 {dimension_numbers = #tpu.dot_dimension_numbers<[1], [1], [0], [0], [0, 0, 1, 0], [], []>} : vector<8x16xf32>, vector<8x16xf32>, vector<8x8xf32> -> vector<8x8xf32>
    %cst_26 = arith.constant dense<0xFF800000> : vector<8xf32>
    %68 = vector.multi_reduction <maximumf>, %67, %cst_26 [1] : vector<8x8xf32> to vector<8xf32>
    %69 = vector.shape_cast %68 : vector<8xf32> to vector<8x1xf32>
    %70 = vector.broadcast %69 : vector<8x1xf32> to vector<8x8xf32>
    %71 = arith.subf %67, %70 : vector<8x8xf32>
    %72 = math.exp %71 : vector<8x8xf32>
    %cst_27 = arith.constant dense<0.000000e+00> : vector<8xf32>
    %73 = vector.multi_reduction <add>, %72, %cst_27 [1] : vector<8x8xf32> to vector<8xf32>
    %74 = vector.shape_cast %73 : vector<8xf32> to vector<8x1xf32>
    %75 = tpu.reciprocal %74 {approx = true} : vector<8x1xf32> -> vector<8x1xf32>
    %76 = vector.broadcast %75 : vector<8x1xf32> to vector<8x8xf32>
    %77 = arith.mulf %72, %76 : vector<8x8xf32>
    %cst_28 = arith.constant dense<0.000000e+00> : vector<8x16xf32>
    %78 = tpu.matmul %77, %66, %cst_28 {dimension_numbers = #tpu.dot_dimension_numbers<[1], [0], [0], [1], [0, 0, 1, 1], [], []>} : vector<8x8xf32>, vector<8x16xf32>, vector<8x16xf32> -> vector<8x16xf32>
    %c8_29 = arith.constant 8 : index
    %c16_30 = arith.constant 16 : index
    %79 = vector.load %arg17[%c8_29, %c16_30] : memref<16x32xf32, #tpu.memory_space<vmem>>, vector<8x16xf32>
    tpu.vector_store %arg17[%c8_29, %c16_30], %78 {strides = array<i32>} : memref<16x32xf32, #tpu.memory_space<vmem>>, vector<8x16xf32>,
    %c0_31 = arith.constant 0 : index
    %c0_32 = arith.constant 0 : index
    %80 = vector.load %arg17[%c0_31, %c0_32] : memref<16x32xf32, #tpu.memory_space<vmem>>, vector<16x32xf32>
    %c0_33 = arith.constant 0 : index
    %c0_34 = arith.constant 0 : index
    %c0_35 = arith.constant 0 : index
    %81 = vector.load %arg6[%c0_33, %c0_34, %c0_35] : memref<1x32x32xf32, #tpu.memory_space<vmem>>, vector<1x32x32xf32>
    %82 = vector.shape_cast %81 : vector<1x32x32xf32> to vector<32x32xf32>
    %cst_36 = arith.constant dense<0.000000e+00> : vector<16x32xf32>
    %83 = tpu.matmul %80, %82, %cst_36 {dimension_numbers = #tpu.dot_dimension_numbers<[1], [0], [0], [1], [0, 0, 1, 1], [], []>} : vector<16x32xf32>, vector<32x32xf32>, vector<16x32xf32> -> vector<16x32xf32>
    %c0_37 = arith.constant 0 : index
    %c0_38 = arith.constant 0 : index
    %c0_39 = arith.constant 0 : index
    %84 = vector.load %arg7[%c0_37, %c0_38, %c0_39] : memref<1x1x32xf32, #tpu.memory_space<vmem>>, vector<1x1x32xf32>
    %85 = vector.shape_cast %84 : vector<1x1x32xf32> to vector<1x32xf32>
    %86 = vector.broadcast %85 : vector<1x32xf32> to vector<16x32xf32>
    %87 = arith.addf %83, %86 : vector<16x32xf32>
    %88 = arith.addf %87, %3 : vector<16x32xf32>
    %c0_40 = arith.constant 0 : index
    %c0_41 = arith.constant 0 : index
    %c0_42 = arith.constant 0 : index
    %89 = vector.load %arg8[%c0_40, %c0_41, %c0_42] : memref<1x1x32xf32, #tpu.memory_space<vmem>>, vector<1x1x32xf32>
    %90 = vector.shape_cast %89 : vector<1x1x32xf32> to vector<1x32xf32>
    %c0_43 = arith.constant 0 : index
    %c0_44 = arith.constant 0 : index
    %c0_45 = arith.constant 0 : index
    %91 = vector.load %arg9[%c0_43, %c0_44, %c0_45] : memref<1x1x32xf32, #tpu.memory_space<vmem>>, vector<1x1x32xf32>
    %92 = vector.shape_cast %91 : vector<1x1x32xf32> to vector<1x32xf32>
    %cst_46 = arith.constant dense<0.000000e+00> : vector<16xf32>
    %93 = vector.multi_reduction <add>, %88, %cst_46 [1] : vector<16x32xf32> to vector<16xf32>
    %94 = vector.shape_cast %93 : vector<16xf32> to vector<16x1xf32>
    %cst_47 = arith.constant 3.200000e+01 : f32
    %95 = vector.broadcast %cst_47 : f32 to vector<16x1xf32>
    %96 = arith.divf %94, %95 : vector<16x1xf32>
    %97 = vector.broadcast %96 : vector<16x1xf32> to vector<16x32xf32>
    %98 = arith.subf %88, %97 : vector<16x32xf32>
    %99 = arith.mulf %98, %98 : vector<16x32xf32>
    %cst_48 = arith.constant dense<0.000000e+00> : vector<16xf32>
    %100 = vector.multi_reduction <add>, %99, %cst_48 [1] : vector<16x32xf32> to vector<16xf32>
    %101 = vector.shape_cast %100 : vector<16xf32> to vector<16x1xf32>
    %cst_49 = arith.constant 3.200000e+01 : f32
    %102 = vector.broadcast %cst_49 : f32 to vector<16x1xf32>
    %103 = arith.divf %101, %102 : vector<16x1xf32>
    %cst_50 = arith.constant 9.99999996E-13 : f32
    %104 = vector.broadcast %cst_50 : f32 to vector<16x1xf32>
    %105 = arith.addf %103, %104 : vector<16x1xf32>
    %106 = math.rsqrt %105 : vector<16x1xf32>
    %107 = vector.broadcast %106 : vector<16x1xf32> to vector<16x32xf32>
    %108 = arith.mulf %98, %107 : vector<16x32xf32>
    %109 = vector.broadcast %90 : vector<1x32xf32> to vector<16x32xf32>
    %110 = arith.mulf %108, %109 : vector<16x32xf32>
    %111 = vector.broadcast %92 : vector<1x32xf32> to vector<16x32xf32>
    %112 = arith.addf %110, %111 : vector<16x32xf32>
    %c0_51 = arith.constant 0 : index
    %c0_52 = arith.constant 0 : index
    %c0_53 = arith.constant 0 : index
    %113 = vector.load %arg10[%c0_51, %c0_52, %c0_53] : memref<1x32x128xf32, #tpu.memory_space<vmem>>, vector<1x32x128xf32>
    %114 = vector.shape_cast %113 : vector<1x32x128xf32> to vector<32x128xf32>
    %cst_54 = arith.constant dense<0.000000e+00> : vector<16x128xf32>
    %115 = tpu.matmul %112, %114, %cst_54 {dimension_numbers = #tpu.dot_dimension_numbers<[1], [0], [0], [1], [0, 0, 1, 1], [], []>} : vector<16x32xf32>, vector<32x128xf32>, vector<16x128xf32> -> vector<16x128xf32>
    %c0_55 = arith.constant 0 : index
    %c0_56 = arith.constant 0 : index
    %c0_57 = arith.constant 0 : index
    %116 = vector.load %arg11[%c0_55, %c0_56, %c0_57] : memref<1x1x128xf32, #tpu.memory_space<vmem>>, vector<1x1x128xf32>
    %117 = vector.shape_cast %116 : vector<1x1x128xf32> to vector<1x128xf32>
    %118 = vector.broadcast %117 : vector<1x128xf32> to vector<16x128xf32>
    %119 = arith.addf %115, %118 : vector<16x128xf32>
    %cst_58 = arith.constant 5.000000e-01 : f32
    %120 = vector.broadcast %cst_58 : f32 to vector<16x128xf32>
    %121 = arith.mulf %120, %119 : vector<16x128xf32>
    %cst_59 = arith.constant 4.471500e-02 : f32
    %122 = vector.broadcast %cst_59 : f32 to vector<16x128xf32>
    %123 = arith.mulf %122, %119 : vector<16x128xf32>
    %124 = arith.mulf %123, %119 : vector<16x128xf32>
    %125 = arith.mulf %124, %119 : vector<16x128xf32>
    %126 = arith.addf %119, %125 : vector<16x128xf32>
    %cst_60 = arith.constant 0.797884583 : f32
    %127 = vector.broadcast %cst_60 : f32 to vector<16x128xf32>
    %128 = arith.mulf %127, %126 : vector<16x128xf32>
    %129 = math.tanh %128 : vector<16x128xf32>
    %cst_61 = arith.constant 1.000000e+00 : f32
    %130 = vector.broadcast %cst_61 : f32 to vector<16x128xf32>
    %131 = arith.addf %130, %129 : vector<16x128xf32>
    %132 = arith.mulf %121, %131 : vector<16x128xf32>
    %c0_62 = arith.constant 0 : index
    %c0_63 = arith.constant 0 : index
    %c0_64 = arith.constant 0 : index
    %133 = vector.load %arg12[%c0_62, %c0_63, %c0_64] : memref<1x128x32xf32, #tpu.memory_space<vmem>>, vector<1x128x32xf32>
    %134 = vector.shape_cast %133 : vector<1x128x32xf32> to vector<128x32xf32>
    %cst_65 = arith.constant dense<0.000000e+00> : vector<16x32xf32>
    %135 = tpu.matmul %132, %134, %cst_65 {dimension_numbers = #tpu.dot_dimension_numbers<[1], [0], [0], [1], [0, 0, 1, 1], [], []>} : vector<16x128xf32>, vector<128x32xf32>, vector<16x32xf32> -> vector<16x32xf32>
    %c0_66 = arith.constant 0 : index
    %c0_67 = arith.constant 0 : index
    %c0_68 = arith.constant 0 : index
    %136 = vector.load %arg13[%c0_66, %c0_67, %c0_68] : memref<1x1x32xf32, #tpu.memory_space<vmem>>, vector<1x1x32xf32>
    %137 = vector.shape_cast %136 : vector<1x1x32xf32> to vector<1x32xf32>
    %138 = vector.broadcast %137 : vector<1x32xf32> to vector<16x32xf32>
    %139 = arith.addf %135, %138 : vector<16x32xf32>
    %140 = arith.addf %139, %112 : vector<16x32xf32>
    %c0_69 = arith.constant 0 : index
    %c0_70 = arith.constant 0 : index
    %c0_71 = arith.constant 0 : index
    %141 = vector.load %arg14[%c0_69, %c0_70, %c0_71] : memref<1x1x32xf32, #tpu.memory_space<vmem>>, vector<1x1x32xf32>
    %142 = vector.shape_cast %141 : vector<1x1x32xf32> to vector<1x32xf32>
    %c0_72 = arith.constant 0 : index
    %c0_73 = arith.constant 0 : index
    %c0_74 = arith.constant 0 : index
    %143 = vector.load %arg15[%c0_72, %c0_73, %c0_74] : memref<1x1x32xf32, #tpu.memory_space<vmem>>, vector<1x1x32xf32>
    %144 = vector.shape_cast %143 : vector<1x1x32xf32> to vector<1x32xf32>
    %cst_75 = arith.constant dense<0.000000e+00> : vector<16xf32>
    %145 = vector.multi_reduction <add>, %140, %cst_75 [1] : vector<16x32xf32> to vector<16xf32>
    %146 = vector.shape_cast %145 : vector<16xf32> to vector<16x1xf32>
    %cst_76 = arith.constant 3.200000e+01 : f32
    %147 = vector.broadcast %cst_76 : f32 to vector<16x1xf32>
    %148 = arith.divf %146, %147 : vector<16x1xf32>
    %149 = vector.broadcast %148 : vector<16x1xf32> to vector<16x32xf32>
    %150 = arith.subf %140, %149 : vector<16x32xf32>
    %151 = arith.mulf %150, %150 : vector<16x32xf32>
    %cst_77 = arith.constant dense<0.000000e+00> : vector<16xf32>
    %152 = vector.multi_reduction <add>, %151, %cst_77 [1] : vector<16x32xf32> to vector<16xf32>
    %153 = vector.shape_cast %152 : vector<16xf32> to vector<16x1xf32>
    %cst_78 = arith.constant 3.200000e+01 : f32
    %154 = vector.broadcast %cst_78 : f32 to vector<16x1xf32>
    %155 = arith.divf %153, %154 : vector<16x1xf32>
    %cst_79 = arith.constant 9.99999996E-13 : f32
    %156 = vector.broadcast %cst_79 : f32 to vector<16x1xf32>
    %157 = arith.addf %155, %156 : vector<16x1xf32>
    %158 = math.rsqrt %157 : vector<16x1xf32>
    %159 = vector.broadcast %158 : vector<16x1xf32> to vector<16x32xf32>
    %160 = arith.mulf %150, %159 : vector<16x32xf32>
    %161 = vector.broadcast %142 : vector<1x32xf32> to vector<16x32xf32>
    %162 = arith.mulf %160, %161 : vector<16x32xf32>
    %163 = vector.broadcast %144 : vector<1x32xf32> to vector<16x32xf32>
    %164 = arith.addf %162, %163 : vector<16x32xf32>
    %c0_80 = arith.constant 0 : index
    %c0_81 = arith.constant 0 : index
    %165 = vector.load %arg16[%c0_80, %c0_81] : memref<16x32xf32, #tpu.memory_space<vmem>>, vector<16x32xf32>
    tpu.vector_store %arg16[%c0_80, %c0_81], %164 {strides = array<i32>} : memref<16x32xf32, #tpu.memory_space<vmem>>, vector<16x32xf32>,
    return
  }
  func.func @transform_0(%arg0: i32) -> (i32, i32) {
    %c0_i32 = arith.constant 0 : i32
    %c0_i32_0 = arith.constant 0 : i32
    %c0_i32_1 = arith.constant 0 : i32
    return %c0_i32, %c0_i32_0 : i32, i32
  }
  func.func @transform_1(%arg0: i32) -> (i32, i32) {
    %c0_i32 = arith.constant 0 : i32
    %c0_i32_0 = arith.constant 0 : i32
    %c0_i32_1 = arith.constant 0 : i32
    return %c0_i32, %c0_i32_0 : i32, i32
  }
  func.func @transform_2(%arg0: i32) -> (i32, i32) {
    %c0_i32 = arith.constant 0 : i32
    %c0_i32_0 = arith.constant 0 : i32
    %c0_i32_1 = arith.constant 0 : i32
    return %c0_i32, %c0_i32_0 : i32, i32
  }
  func.func @transform_3(%arg0: i32) -> (i32, i32, i32) {
    %c0_i32 = arith.constant 0 : i32
    %c0_i32_0 = arith.constant 0 : i32
    %c0_i32_1 = arith.constant 0 : i32
    return %arg0, %c0_i32, %c0_i32_0 : i32, i32, i32
  }
  func.func @transform_4(%arg0: i32) -> (i32, i32, i32) {
    %c0_i32 = arith.constant 0 : i32
    %c0_i32_0 = arith.constant 0 : i32
    %c0_i32_1 = arith.constant 0 : i32
    return %arg0, %c0_i32, %c0_i32_0 : i32, i32, i32
  }
  func.func @transform_5(%arg0: i32) -> (i32, i32, i32) {
    %c0_i32 = arith.constant 0 : i32
    %c0_i32_0 = arith.constant 0 : i32
    %c0_i32_1 = arith.constant 0 : i32
    return %arg0, %c0_i32, %c0_i32_0 : i32, i32, i32
  }
  func.func @transform_6(%arg0: i32) -> (i32, i32, i32) {
    %c0_i32 = arith.constant 0 : i32
    %c0_i32_0 = arith.constant 0 : i32
    %c0_i32_1 = arith.constant 0 : i32
    return %arg0, %c0_i32, %c0_i32_0 : i32, i32, i32
  }
  func.func @transform_7(%arg0: i32) -> (i32, i32, i32) {
    %c0_i32 = arith.constant 0 : i32
    %c0_i32_0 = arith.constant 0 : i32
    %c0_i32_1 = arith.constant 0 : i32
    return %arg0, %c0_i32, %c0_i32_0 : i32, i32, i32
  }
  func.func @transform_8(%arg0: i32) -> (i32, i32, i32) {
    %c0_i32 = arith.constant 0 : i32
    %c0_i32_0 = arith.constant 0 : i32
    %c0_i32_1 = arith.constant 0 : i32
    return %arg0, %c0_i32, %c0_i32_0 : i32, i32, i32
  }
  func.func @transform_9(%arg0: i32) -> (i32, i32, i32) {
    %c0_i32 = arith.constant 0 : i32
    %c0_i32_0 = arith.constant 0 : i32
    %c0_i32_1 = arith.constant 0 : i32
    return %arg0, %c0_i32, %c0_i32_0 : i32, i32, i32
  }
  func.func @transform_10(%arg0: i32) -> (i32, i32, i32) {
    %c0_i32 = arith.constant 0 : i32
    %c0_i32_0 = arith.constant 0 : i32
    %c0_i32_1 = arith.constant 0 : i32
    return %arg0, %c0_i32, %c0_i32_0 : i32, i32, i32
  }
  func.func @transform_11(%arg0: i32) -> (i32, i32, i32) {
    %c0_i32 = arith.constant 0 : i32
    %c0_i32_0 = arith.constant 0 : i32
    %c0_i32_1 = arith.constant 0 : i32
    return %arg0, %c0_i32, %c0_i32_0 : i32, i32, i32
  }
  func.func @transform_12(%arg0: i32) -> (i32, i32, i32) {
    %c0_i32 = arith.constant 0 : i32
    %c0_i32_0 = arith.constant 0 : i32
    %c0_i32_1 = arith.constant 0 : i32
    return %arg0, %c0_i32, %c0_i32_0 : i32, i32, i32
  }
  func.func @transform_13(%arg0: i32) -> (i32, i32, i32) {
    %c0_i32 = arith.constant 0 : i32
    %c0_i32_0 = arith.constant 0 : i32
    %c0_i32_1 = arith.constant 0 : i32
    return %arg0, %c0_i32, %c0_i32_0 : i32, i32, i32
  }
  func.func @transform_14(%arg0: i32) -> (i32, i32, i32) {
    %c0_i32 = arith.constant 0 : i32
    %c0_i32_0 = arith.constant 0 : i32
    %c0_i32_1 = arith.constant 0 : i32
    return %arg0, %c0_i32, %c0_i32_0 : i32, i32, i32
  }
  func.func @transform_15(%arg0: i32) -> (i32, i32) {
    %c0_i32 = arith.constant 0 : i32
    %c0_i32_0 = arith.constant 0 : i32
    %c0_i32_1 = arith.constant 0 : i32
    return %c0_i32, %c0_i32_0 : i32, i32
  }
}

module attributes {stable_mosaic.version = 11 : i64} {
  func.func @_head_loss_kernel(%arg0: i32, %arg1: memref<2x32xf32, #tpu.memory_space<vmem>>, %arg2: memref<32x32xf32, #tpu.memory_space<vmem>>, %arg3: memref<1x32xf32, #tpu.memory_space<vmem>>, %arg4: memref<32x512xf32, #tpu.memory_space<vmem>>, %arg5: memref<1x512xf32, #tpu.memory_space<vmem>>, %arg6: memref<32x384xf32, #tpu.memory_space<vmem>>, %arg7: memref<1x384xf32, #tpu.memory_space<vmem>>, %arg8: memref<2x256xi32, #tpu.memory_space<vmem>>, %arg9: memref<2x192xi32, #tpu.memory_space<vmem>>, %arg10: memref<2x512xf32, #tpu.memory_space<vmem>>, %arg11: memref<2x384xf32, #tpu.memory_space<vmem>>, %arg12: memref<1x1xf32, #tpu.memory_space<vmem>>) attributes {dimension_semantics = [#tpu.dimension_semantics<arbitrary>], iteration_bounds = array<i64: 1>, scalar_prefetch = 0 : i64, scratch_operands = 0 : i64, tpu.core_type = #tpu.core_type<tc>, window_params = [{pipeline_mode = #tpu.pipeline_mode<synchronous>, transform_indices = @transform_0, window_bounds = array<i64: 2, 32>}, {pipeline_mode = #tpu.pipeline_mode<synchronous>, transform_indices = @transform_1, window_bounds = array<i64: 32, 32>}, {pipeline_mode = #tpu.pipeline_mode<synchronous>, transform_indices = @transform_2, window_bounds = array<i64: 1, 32>}, {pipeline_mode = #tpu.pipeline_mode<synchronous>, transform_indices = @transform_3, window_bounds = array<i64: 32, 512>}, {pipeline_mode = #tpu.pipeline_mode<synchronous>, transform_indices = @transform_4, window_bounds = array<i64: 1, 512>}, {pipeline_mode = #tpu.pipeline_mode<synchronous>, transform_indices = @transform_5, window_bounds = array<i64: 32, 384>}, {pipeline_mode = #tpu.pipeline_mode<synchronous>, transform_indices = @transform_6, window_bounds = array<i64: 1, 384>}, {pipeline_mode = #tpu.pipeline_mode<synchronous>, transform_indices = @transform_7, window_bounds = array<i64: 2, 256>}, {pipeline_mode = #tpu.pipeline_mode<synchronous>, transform_indices = @transform_8, window_bounds = array<i64: 2, 192>}, {pipeline_mode = #tpu.pipeline_mode<synchronous>, transform_indices = @transform_9, window_bounds = array<i64: 2, 512>}, {pipeline_mode = #tpu.pipeline_mode<synchronous>, transform_indices = @transform_10, window_bounds = array<i64: 2, 384>}, {pipeline_mode = #tpu.pipeline_mode<synchronous>, transform_indices = @transform_11, window_bounds = array<i64: 1, 1>}]} {
    %c0 = arith.constant 0 : index
    %c0_0 = arith.constant 0 : index
    %0 = vector.load %arg1[%c0, %c0_0] : memref<2x32xf32, #tpu.memory_space<vmem>>, vector<2x32xf32>
    %c0_1 = arith.constant 0 : index
    %c0_2 = arith.constant 0 : index
    %1 = vector.load %arg2[%c0_1, %c0_2] : memref<32x32xf32, #tpu.memory_space<vmem>>, vector<32x32xf32>
    %cst = arith.constant dense<0.000000e+00> : vector<2x32xf32>
    %2 = tpu.matmul %0, %1, %cst {dimension_numbers = #tpu.dot_dimension_numbers<[1], [0], [0], [1], [0, 0, 1, 1], [], []>} : vector<2x32xf32>, vector<32x32xf32>, vector<2x32xf32> -> vector<2x32xf32>
    %c0_3 = arith.constant 0 : index
    %c0_4 = arith.constant 0 : index
    %3 = vector.load %arg3[%c0_3, %c0_4] : memref<1x32xf32, #tpu.memory_space<vmem>>, vector<1x32xf32>
    %4 = vector.broadcast %3 : vector<1x32xf32> to vector<2x32xf32>
    %5 = arith.addf %2, %4 : vector<2x32xf32>
    %6 = math.tanh %5 : vector<2x32xf32>
    %c0_5 = arith.constant 0 : index
    %c0_6 = arith.constant 0 : index
    %7 = vector.load %arg4[%c0_5, %c0_6] : memref<32x512xf32, #tpu.memory_space<vmem>>, vector<32x512xf32>
    %cst_7 = arith.constant dense<0.000000e+00> : vector<2x512xf32>
    %8 = tpu.matmul %6, %7, %cst_7 {dimension_numbers = #tpu.dot_dimension_numbers<[1], [0], [0], [1], [0, 0, 1, 1], [], []>} : vector<2x32xf32>, vector<32x512xf32>, vector<2x512xf32> -> vector<2x512xf32>
    %c0_8 = arith.constant 0 : index
    %c0_9 = arith.constant 0 : index
    %9 = vector.load %arg5[%c0_8, %c0_9] : memref<1x512xf32, #tpu.memory_space<vmem>>, vector<1x512xf32>
    %10 = vector.broadcast %9 : vector<1x512xf32> to vector<2x512xf32>
    %11 = arith.addf %8, %10 : vector<2x512xf32>
    %c0_10 = arith.constant 0 : index
    %c0_11 = arith.constant 0 : index
    %12 = vector.load %arg6[%c0_10, %c0_11] : memref<32x384xf32, #tpu.memory_space<vmem>>, vector<32x384xf32>
    %cst_12 = arith.constant dense<0.000000e+00> : vector<2x384xf32>
    %13 = tpu.matmul %6, %12, %cst_12 {dimension_numbers = #tpu.dot_dimension_numbers<[1], [0], [0], [1], [0, 0, 1, 1], [], []>} : vector<2x32xf32>, vector<32x384xf32>, vector<2x384xf32> -> vector<2x384xf32>
    %c0_13 = arith.constant 0 : index
    %c0_14 = arith.constant 0 : index
    %14 = vector.load %arg7[%c0_13, %c0_14] : memref<1x384xf32, #tpu.memory_space<vmem>>, vector<1x384xf32>
    %15 = vector.broadcast %14 : vector<1x384xf32> to vector<2x384xf32>
    %16 = arith.addf %13, %15 : vector<2x384xf32>
    %c0_15 = arith.constant 0 : index
    %c0_16 = arith.constant 0 : index
    %17 = vector.load %arg10[%c0_15, %c0_16] : memref<2x512xf32, #tpu.memory_space<vmem>>, vector<2x512xf32>
    tpu.vector_store %arg10[%c0_15, %c0_16], %11 {strides = array<i32>} : memref<2x512xf32, #tpu.memory_space<vmem>>, vector<2x512xf32>,
    %c0_17 = arith.constant 0 : index
    %c0_18 = arith.constant 0 : index
    %18 = vector.load %arg11[%c0_17, %c0_18] : memref<2x384xf32, #tpu.memory_space<vmem>>, vector<2x384xf32>
    tpu.vector_store %arg11[%c0_17, %c0_18], %16 {strides = array<i32>} : memref<2x384xf32, #tpu.memory_space<vmem>>, vector<2x384xf32>,
    %c0_19 = arith.constant 0 : index
    %c0_20 = arith.constant 0 : index
    %19 = vector.load %arg9[%c0_19, %c0_20] : memref<2x192xi32, #tpu.memory_space<vmem>>, vector<2x192xi32>
    %20 = vector.extract_strided_slice %16 {offsets = [0, 0], sizes = [2, 192], strides = [1, 1]} : vector<2x384xf32> to vector<2x192xf32>
    %21 = vector.extract_strided_slice %16 {offsets = [0, 192], sizes = [2, 192], strides = [1, 1]} : vector<2x384xf32> to vector<2x192xf32>
    %22 = arith.maximumf %20, %21 : vector<2x192xf32>
    %23 = arith.subf %20, %22 : vector<2x192xf32>
    %24 = math.exp %23 : vector<2x192xf32>
    %25 = arith.subf %21, %22 : vector<2x192xf32>
    %26 = math.exp %25 : vector<2x192xf32>
    %27 = arith.addf %24, %26 : vector<2x192xf32>
    %28 = math.log %27 : vector<2x192xf32>
    %29 = arith.addf %22, %28 : vector<2x192xf32>
    %c1_i32 = arith.constant 1 : i32
    %30 = vector.broadcast %c1_i32 : i32 to vector<2x192xi32>
    %31 = arith.cmpi eq, %19, %30 : vector<2x192xi32>
    %32 = arith.select %31, %21, %20 : vector<2x192xi1>, vector<2x192xf32>
    %33 = arith.subf %29, %32 : vector<2x192xf32>
    %34 = tpu.iota {dimensions = array<i32: 1>} : vector<2x192xi32>
    %c183_i32 = arith.constant 183 : i32
    %35 = vector.broadcast %c183_i32 : i32 to vector<2x192xi32>
    %36 = arith.cmpi slt, %34, %35 : vector<2x192xi32>
    %cst_21 = arith.constant 0.000000e+00 : f32
    %37 = vector.broadcast %cst_21 : f32 to vector<2x192xf32>
    %38 = arith.select %36, %33, %37 : vector<2x192xi1>, vector<2x192xf32>
    %39 = vector.shape_cast %38 : vector<2x192xf32> to vector<1x2x192xf32>
    %cst_22 = arith.constant dense<0.000000e+00> : vector<1xf32>
    %40 = vector.multi_reduction <add>, %39, %cst_22 [1, 2] : vector<1x2x192xf32> to vector<1xf32>
    %41 = vector.shape_cast %40 : vector<1xf32> to vector<1x1x1xf32>
    %42 = vector.extract %41[0, 0, 0] : f32 from vector<1x1x1xf32>
    %cst_23 = arith.constant 5.000000e-01 : f32
    %43 = arith.mulf %42, %cst_23 : f32
    %c0_24 = arith.constant 0 : index
    %c0_25 = arith.constant 0 : index
    %44 = vector.load %arg8[%c0_24, %c0_25] : memref<2x256xi32, #tpu.memory_space<vmem>>, vector<2x256xi32>
    %45 = vector.extract_strided_slice %11 {offsets = [0, 0], sizes = [2, 256], strides = [1, 1]} : vector<2x512xf32> to vector<2x256xf32>
    %46 = vector.extract_strided_slice %11 {offsets = [0, 256], sizes = [2, 256], strides = [1, 1]} : vector<2x512xf32> to vector<2x256xf32>
    %47 = arith.maximumf %45, %46 : vector<2x256xf32>
    %48 = arith.subf %45, %47 : vector<2x256xf32>
    %49 = math.exp %48 : vector<2x256xf32>
    %50 = arith.subf %46, %47 : vector<2x256xf32>
    %51 = math.exp %50 : vector<2x256xf32>
    %52 = arith.addf %49, %51 : vector<2x256xf32>
    %53 = math.log %52 : vector<2x256xf32>
    %54 = arith.addf %47, %53 : vector<2x256xf32>
    %c1_i32_26 = arith.constant 1 : i32
    %55 = vector.broadcast %c1_i32_26 : i32 to vector<2x256xi32>
    %56 = arith.cmpi eq, %44, %55 : vector<2x256xi32>
    %57 = arith.select %56, %46, %45 : vector<2x256xi1>, vector<2x256xf32>
    %58 = arith.subf %54, %57 : vector<2x256xf32>
    %59 = tpu.iota {dimensions = array<i32: 1>} : vector<2x256xi32>
    %c200_i32 = arith.constant 200 : i32
    %60 = vector.broadcast %c200_i32 : i32 to vector<2x256xi32>
    %61 = arith.cmpi slt, %59, %60 : vector<2x256xi32>
    %cst_27 = arith.constant 0.000000e+00 : f32
    %62 = vector.broadcast %cst_27 : f32 to vector<2x256xf32>
    %63 = arith.select %61, %58, %62 : vector<2x256xi1>, vector<2x256xf32>
    %64 = vector.shape_cast %63 : vector<2x256xf32> to vector<1x2x256xf32>
    %cst_28 = arith.constant dense<0.000000e+00> : vector<1xf32>
    %65 = vector.multi_reduction <add>, %64, %cst_28 [1, 2] : vector<1x2x256xf32> to vector<1xf32>
    %66 = vector.shape_cast %65 : vector<1xf32> to vector<1x1x1xf32>
    %67 = vector.extract %66[0, 0, 0] : f32 from vector<1x1x1xf32>
    %cst_29 = arith.constant 5.000000e-01 : f32
    %68 = arith.mulf %67, %cst_29 : f32
    %69 = arith.addf %43, %68 : f32
    %70 = vector.broadcast %69 : f32 to vector<1x1xf32>
    %c0_30 = arith.constant 0 : index
    %c0_31 = arith.constant 0 : index
    %71 = vector.load %arg12[%c0_30, %c0_31] : memref<1x1xf32, #tpu.memory_space<vmem>>, vector<1x1xf32>
    tpu.vector_store %arg12[%c0_30, %c0_31], %70 {strides = array<i32>} : memref<1x1xf32, #tpu.memory_space<vmem>>, vector<1x1xf32>,
    return
  }
  func.func @transform_0(%arg0: i32) -> (i32, i32) {
    %c0_i32 = arith.constant 0 : i32
    %c0_i32_0 = arith.constant 0 : i32
    %c0_i32_1 = arith.constant 0 : i32
    return %c0_i32, %c0_i32_0 : i32, i32
  }
  func.func @transform_1(%arg0: i32) -> (i32, i32) {
    %c0_i32 = arith.constant 0 : i32
    %c0_i32_0 = arith.constant 0 : i32
    %c0_i32_1 = arith.constant 0 : i32
    return %c0_i32, %c0_i32_0 : i32, i32
  }
  func.func @transform_2(%arg0: i32) -> (i32, i32) {
    %c0_i32 = arith.constant 0 : i32
    %c0_i32_0 = arith.constant 0 : i32
    %c0_i32_1 = arith.constant 0 : i32
    return %c0_i32, %c0_i32_0 : i32, i32
  }
  func.func @transform_3(%arg0: i32) -> (i32, i32) {
    %c0_i32 = arith.constant 0 : i32
    %c0_i32_0 = arith.constant 0 : i32
    %c0_i32_1 = arith.constant 0 : i32
    return %c0_i32, %c0_i32_0 : i32, i32
  }
  func.func @transform_4(%arg0: i32) -> (i32, i32) {
    %c0_i32 = arith.constant 0 : i32
    %c0_i32_0 = arith.constant 0 : i32
    %c0_i32_1 = arith.constant 0 : i32
    return %c0_i32, %c0_i32_0 : i32, i32
  }
  func.func @transform_5(%arg0: i32) -> (i32, i32) {
    %c0_i32 = arith.constant 0 : i32
    %c0_i32_0 = arith.constant 0 : i32
    %c0_i32_1 = arith.constant 0 : i32
    return %c0_i32, %c0_i32_0 : i32, i32
  }
  func.func @transform_6(%arg0: i32) -> (i32, i32) {
    %c0_i32 = arith.constant 0 : i32
    %c0_i32_0 = arith.constant 0 : i32
    %c0_i32_1 = arith.constant 0 : i32
    return %c0_i32, %c0_i32_0 : i32, i32
  }
  func.func @transform_7(%arg0: i32) -> (i32, i32) {
    %c0_i32 = arith.constant 0 : i32
    %c0_i32_0 = arith.constant 0 : i32
    %c0_i32_1 = arith.constant 0 : i32
    return %c0_i32, %c0_i32_0 : i32, i32
  }
  func.func @transform_8(%arg0: i32) -> (i32, i32) {
    %c0_i32 = arith.constant 0 : i32
    %c0_i32_0 = arith.constant 0 : i32
    %c0_i32_1 = arith.constant 0 : i32
    return %c0_i32, %c0_i32_0 : i32, i32
  }
  func.func @transform_9(%arg0: i32) -> (i32, i32) {
    %c0_i32 = arith.constant 0 : i32
    %c0_i32_0 = arith.constant 0 : i32
    %c0_i32_1 = arith.constant 0 : i32
    return %c0_i32, %c0_i32_0 : i32, i32
  }
  func.func @transform_10(%arg0: i32) -> (i32, i32) {
    %c0_i32 = arith.constant 0 : i32
    %c0_i32_0 = arith.constant 0 : i32
    %c0_i32_1 = arith.constant 0 : i32
    return %c0_i32, %c0_i32_0 : i32, i32
  }
  func.func @transform_11(%arg0: i32) -> (i32, i32) {
    %c0_i32 = arith.constant 0 : i32
    %c0_i32_0 = arith.constant 0 : i32
    %c0_i32_1 = arith.constant 0 : i32
    return %c0_i32, %c0_i32_0 : i32, i32
  }
}

</mosaic_0001>

<llo_original>
// kernel: ljp_bert_forward.2
$region0: #{ljp_bert_forward.2}
  #allocation0 [shape = 'u32[]', space=smem, size = 0x4, offset = 0x4, fixed_abs, tag = 'smem constant byte address 0x4 - core index']
  #allocation1 [shape = 'u32[72,128]{1,0:T(1,128)}', space=vmem, size = 0x9000, scoped, tag = 'internal scratch']
  #allocation2 [shape = 'f32[16,32]{1,0:T(8,128)}', space=vmem, size = 0x2000, scoped, tag = 'scratch operand']
  %s0 = inlined_call_operand.vmem [shape: f32[16,32], index: 0, kind: input, shape index: {}]
  %s1 = inlined_call_operand.vmem [shape: f32[1,32], index: 1, kind: input, shape index: {}]
  %s2 = inlined_call_operand.vmem [shape: f32[1,32], index: 2, kind: input, shape index: {}]
  %s3 = inlined_call_operand.vmem [shape: f32[2,32,96], index: 3, kind: input, shape index: {}]
  %s4 = inlined_call_operand.vmem [shape: f32[2,1,96], index: 4, kind: input, shape index: {}]
  %s5 = inlined_call_operand.vmem [shape: f32[2,32,32], index: 5, kind: input, shape index: {}]
  %s6 = inlined_call_operand.vmem [shape: f32[2,1,32], index: 6, kind: input, shape index: {}]
  %s7 = inlined_call_operand.vmem [shape: f32[2,1,32], index: 7, kind: input, shape index: {}]
  %s8 = inlined_call_operand.vmem [shape: f32[2,1,32], index: 8, kind: input, shape index: {}]
  %s9 = inlined_call_operand.vmem [shape: f32[2,32,128], index: 9, kind: input, shape index: {}]
  %s10 = inlined_call_operand.vmem [shape: f32[2,1,128], index: 10, kind: input, shape index: {}]
  %s11 = inlined_call_operand.vmem [shape: f32[2,128,32], index: 11, kind: input, shape index: {}]
  %s12 = inlined_call_operand.vmem [shape: f32[2,1,32], index: 12, kind: input, shape index: {}]
  %s13 = inlined_call_operand.vmem [shape: f32[2,1,32], index: 13, kind: input, shape index: {}]
  %s14 = inlined_call_operand.vmem [shape: f32[2,1,32], index: 14, kind: input, shape index: {}]
  %s15 = inlined_call_operand.vmem [shape: f32[16,32], index: 15, kind: output, shape index: {}]
  %s16 = sld [smem:[#allocation0]]
  $region97: #{ljp_bert_forward.2} parent=0
    _
  %s18 = ssub.s32 1, %s16
  %s19 = scalar_select 0, %s18, %s16
  loop: start=0, step=1, limit=4
  $region2: #{ljp_bert_forward.2} parent=0 // loop_pre_header
    _
  $region3: #{ljp_bert_forward.2} parent=0 // loop_header
    %s21 = sphi 0, %s25
    %p22 = scmp.ge.s32.totalorder %s21, 4
    %s29 = sphi 0, %s29
    %s31 = sphi 0, %s29
    %s32 = sphi 0, %s31
    %s46 = sphi 0, %s32
    %s50 = sphi 0, %s50
    %s52 = sphi 0, %s50
    %s53 = sphi 0, %s52
    %s67 = sphi 0, %s53
    %s71 = sphi 0, %s71
    %s73 = sphi 0, %s71
    %s74 = sphi 0, %s73
    %s88 = sphi 0, %s74
    %s94 = sphi 0, %s96
    %s97 = sphi 0, %s94
    %s98 = sphi 0, %s97
    %s114 = sphi 0, %s98
    %s120 = sphi 0, %s122
    %s123 = sphi 0, %s120
    %s124 = sphi 0, %s123
    %s140 = sphi 0, %s124
    %s146 = sphi 0, %s148
    %s149 = sphi 0, %s146
    %s150 = sphi 0, %s149
    %s166 = sphi 0, %s150
    %s172 = sphi 0, %s174
    %s175 = sphi 0, %s172
    %s176 = sphi 0, %s175
    %s192 = sphi 0, %s176
    %s198 = sphi 0, %s200
    %s201 = sphi 0, %s198
    %s202 = sphi 0, %s201
    %s218 = sphi 0, %s202
    %s224 = sphi 0, %s226
    %s227 = sphi 0, %s224
    %s228 = sphi 0, %s227
    %s244 = sphi 0, %s228
    %s250 = sphi 0, %s252
    %s253 = sphi 0, %s250
    %s254 = sphi 0, %s253
    %s270 = sphi 0, %s254
    %s276 = sphi 0, %s278
    %s279 = sphi 0, %s276
    %s280 = sphi 0, %s279
    %s296 = sphi 0, %s280
    %s302 = sphi 0, %s304
    %s305 = sphi 0, %s302
    %s306 = sphi 0, %s305
    %s322 = sphi 0, %s306
    %s328 = sphi 0, %s330
    %s331 = sphi 0, %s328
    %s332 = sphi 0, %s331
    %s348 = sphi 0, %s332
    %s354 = sphi 0, %s356
    %s357 = sphi 0, %s354
    %s358 = sphi 0, %s357
    %s374 = sphi 0, %s358
    %s380 = sphi 0, %s382
    %s383 = sphi 0, %s380
    %s384 = sphi 0, %s383
    %s400 = sphi 0, %s384
    %s404 = sphi 0, %s404
    %s406 = sphi 0, %s404
    %s407 = sphi 0, %s406
    %s421 = sphi 0, %s407
  $region4: #{ljp_bert_forward.2} parent=0 // loop_header_branch
    %24 = sbr.rel (%p22) target = $region8
  $region5: #{ljp_bert_forward.2} parent=0 // loop_body
    %s26 = ssub.s32 %s21, 1
    %s27 = ssub.s32 %s21, 2
    %s28 = sadd.s32 %s21, 1
    %s30 = sadd.s32 %s29, 1
    %p33 = scmp.eq.s32.totalorder %s21, 1
    %p34 = scmp.ne.s32.totalorder %s29, %s31
    %p35 = scmp.eq.s32.totalorder %s21, 0
    %p36 = por %p34, %p35
    %p37 = scmp.ne.s32.totalorder %s29, %s31
    %p38 = scmp.eq.s32.totalorder %s26, 1
    %p39 = por %p37, %p38
    %p40 = scmp.ne.s32.totalorder %s31, %s32
    %p41 = scmp.eq.s32.totalorder %s26, 0
    %p42 = por %p40, %p41
    %p43 = scmp.ne.s32.totalorder %s31, %s32
    %p44 = scmp.eq.s32.totalorder %s27, 1
    %p45 = por %p43, %p44
    %p47 = scmp.ne.s32.totalorder %s32, %s46
    %p48 = scmp.eq.s32.totalorder %s27, 0
    %p49 = por %p47, %p48
    %s51 = sadd.s32 %s50, 1
    %p54 = scmp.eq.s32.totalorder %s21, 1
    %p55 = scmp.ne.s32.totalorder %s50, %s52
    %p56 = scmp.eq.s32.totalorder %s21, 0
    %p57 = por %p55, %p56
    %p58 = scmp.ne.s32.totalorder %s50, %s52
    %p59 = scmp.eq.s32.totalorder %s26, 1
    %p60 = por %p58, %p59
    %p61 = scmp.ne.s32.totalorder %s52, %s53
    %p62 = scmp.eq.s32.totalorder %s26, 0
    %p63 = por %p61, %p62
    %p64 = scmp.ne.s32.totalorder %s52, %s53
    %p65 = scmp.eq.s32.totalorder %s27, 1
    %p66 = por %p64, %p65
    %p68 = scmp.ne.s32.totalorder %s53, %s67
    %p69 = scmp.eq.s32.totalorder %s27, 0
    %p70 = por %p68, %p69
    %s72 = sadd.s32 %s71, 1
    %p75 = scmp.eq.s32.totalorder %s21, 1
    %p76 = scmp.ne.s32.totalorder %s71, %s73
    %p77 = scmp.eq.s32.totalorder %s21, 0
    %p78 = por %p76, %p77
    %p79 = scmp.ne.s32.totalorder %s71, %s73
    %p80 = scmp.eq.s32.totalorder %s26, 1
    %p81 = por %p79, %p80
    %p82 = scmp.ne.s32.totalorder %s73, %s74
    %p83 = scmp.eq.s32.totalorder %s26, 0
    %p84 = por %p82, %p83
    %p85 = scmp.ne.s32.totalorder %s73, %s74
    %p86 = scmp.eq.s32.totalorder %s27, 1
    %p87 = por %p85, %p86
    %p89 = scmp.ne.s32.totalorder %s74, %s88
    %p90 = scmp.eq.s32.totalorder %s27, 0
    %p91 = por %p89, %p90
    %s92 = ssub.s32 %s21, %s28
    %p93 = scmp.eq.s32.totalorder %s92, 0
    %s95 = sadd.s32 %s94, 1
    %s96 = scalar_select %p93, %s94, %s95
    %p99 = pneg %p93
    %p100 = scmp.eq.s32.totalorder %s21, 1
    %p101 = por %p99, %p100
    %p102 = scmp.ne.s32.totalorder %s94, %s97
    %p103 = scmp.eq.s32.totalorder %s21, 0
    %p104 = por %p102, %p103
    %p105 = scmp.ne.s32.totalorder %s94, %s97
    %p106 = scmp.eq.s32.totalorder %s26, 1
    %p107 = por %p105, %p106
    %p108 = scmp.ne.s32.totalorder %s97, %s98
    %p109 = scmp.eq.s32.totalorder %s26, 0
    %p110 = por %p108, %p109
    %p111 = scmp.ne.s32.totalorder %s97, %s98
    %p112 = scmp.eq.s32.totalorder %s27, 1
    %p113 = por %p111, %p112
    %p115 = scmp.ne.s32.totalorder %s98, %s114
    %p116 = scmp.eq.s32.totalorder %s27, 0
    %p117 = por %p115, %p116
    %s118 = ssub.s32 %s21, %s28
    %p119 = scmp.eq.s32.totalorder %s118, 0
    %s121 = sadd.s32 %s120, 1
    %s122 = scalar_select %p119, %s120, %s121
    %p125 = pneg %p119
    %p126 = scmp.eq.s32.totalorder %s21, 1
    %p127 = por %p125, %p126
    %p128 = scmp.ne.s32.totalorder %s120, %s123
    %p129 = scmp.eq.s32.totalorder %s21, 0
    %p130 = por %p128, %p129
    %p131 = scmp.ne.s32.totalorder %s120, %s123
    %p132 = scmp.eq.s32.totalorder %s26, 1
    %p133 = por %p131, %p132
    %p134 = scmp.ne.s32.totalorder %s123, %s124
    %p135 = scmp.eq.s32.totalorder %s26, 0
    %p136 = por %p134, %p135
    %p137 = scmp.ne.s32.totalorder %s123, %s124
    %p138 = scmp.eq.s32.totalorder %s27, 1
    %p139 = por %p137, %p138
    %p141 = scmp.ne.s32.totalorder %s124, %s140
    %p142 = scmp.eq.s32.totalorder %s27, 0
    %p143 = por %p141, %p142
    %s144 = ssub.s32 %s21, %s28
    %p145 = scmp.eq.s32.totalorder %s144, 0
    %s147 = sadd.s32 %s146, 1
    %s148 = scalar_select %p145, %s146, %s147
    %p151 = pneg %p145
    %p152 = scmp.eq.s32.totalorder %s21, 1
    %p153 = por %p151, %p152
    %p154 = scmp.ne.s32.totalorder %s146, %s149
    %p155 = scmp.eq.s32.totalorder %s21, 0
    %p156 = por %p154, %p155
    %p157 = scmp.ne.s32.totalorder %s146, %s149
    %p158 = scmp.eq.s32.totalorder %s26, 1
    %p159 = por %p157, %p158
    %p160 = scmp.ne.s32.totalorder %s149, %s150
    %p161 = scmp.eq.s32.totalorder %s26, 0
    %p162 = por %p160, %p161
    %p163 = scmp.ne.s32.totalorder %s149, %s150
    %p164 = scmp.eq.s32.totalorder %s27, 1
    %p165 = por %p163, %p164
    %p167 = scmp.ne.s32.totalorder %s150, %s166
    %p168 = scmp.eq.s32.totalorder %s27, 0
    %p169 = por %p167, %p168
    %s170 = ssub.s32 %s21, %s28
    %p171 = scmp.eq.s32.totalorder %s170, 0
    %s173 = sadd.s32 %s172, 1
    %s174 = scalar_select %p171, %s172, %s173
    %p177 = pneg %p171
    %p178 = scmp.eq.s32.totalorder %s21, 1
    %p179 = por %p177, %p178
    %p180 = scmp.ne.s32.totalorder %s172, %s175
    %p181 = scmp.eq.s32.totalorder %s21, 0
    %p182 = por %p180, %p181
    %p183 = scmp.ne.s32.totalorder %s172, %s175
    %p184 = scmp.eq.s32.totalorder %s26, 1
    %p185 = por %p183, %p184
    %p186 = scmp.ne.s32.totalorder %s175, %s176
    %p187 = scmp.eq.s32.totalorder %s26, 0
    %p188 = por %p186, %p187
    %p189 = scmp.ne.s32.totalorder %s175, %s176
    %p190 = scmp.eq.s32.totalorder %s27, 1
    %p191 = por %p189, %p190
    %p193 = scmp.ne.s32.totalorder %s176, %s192
    %p194 = scmp.eq.s32.totalorder %s27, 0
    %p195 = por %p193, %p194
    %s196 = ssub.s32 %s21, %s28
    %p197 = scmp.eq.s32.totalorder %s196, 0
    %s199 = sadd.s32 %s198, 1
    %s200 = scalar_select %p197, %s198, %s199
    %p203 = pneg %p197
    %p204 = scmp.eq.s32.totalorder %s21, 1
    %p205 = por %p203, %p204
    %p206 = scmp.ne.s32.totalorder %s198, %s201
    %p207 = scmp.eq.s32.totalorder %s21, 0
    %p208 = por %p206, %p207
    %p209 = scmp.ne.s32.totalorder %s198, %s201
    %p210 = scmp.eq.s32.totalorder %s26, 1
    %p211 = por %p209, %p210
    %p212 = scmp.ne.s32.totalorder %s201, %s202
    %p213 = scmp.eq.s32.totalorder %s26, 0
    %p214 = por %p212, %p213
    %p215 = scmp.ne.s32.totalorder %s201, %s202
    %p216 = scmp.eq.s32.totalorder %s27, 1
    %p217 = por %p215, %p216
    %p219 = scmp.ne.s32.totalorder %s202, %s218
    %p220 = scmp.eq.s32.totalorder %s27, 0
    %p221 = por %p219, %p220
    %s222 = ssub.s32 %s21, %s28
    %p223 = scmp.eq.s32.totalorder %s222, 0
    %s225 = sadd.s32 %s224, 1
    %s226 = scalar_select %p223, %s224, %s225
    %p229 = pneg %p223
    %p230 = scmp.eq.s32.totalorder %s21, 1
    %p231 = por %p229, %p230
    %p232 = scmp.ne.s32.totalorder %s224, %s227
    %p233 = scmp.eq.s32.totalorder %s21, 0
    %p234 = por %p232, %p233
    %p235 = scmp.ne.s32.totalorder %s224, %s227
    %p236 = scmp.eq.s32.totalorder %s26, 1
    %p237 = por %p235, %p236
    %p238 = scmp.ne.s32.totalorder %s227, %s228
    %p239 = scmp.eq.s32.totalorder %s26, 0
    %p240 = por %p238, %p239
    %p241 = scmp.ne.s32.totalorder %s227, %s228
    %p242 = scmp.eq.s32.totalorder %s27, 1
    %p243 = por %p241, %p242
    %p245 = scmp.ne.s32.totalorder %s228, %s244
    %p246 = scmp.eq.s32.totalorder %s27, 0
    %p247 = por %p245, %p246
    %s248 = ssub.s32 %s21, %s28
    %p249 = scmp.eq.s32.totalorder %s248, 0
    %s251 = sadd.s32 %s250, 1
    %s252 = scalar_select %p249, %s250, %s251
    %p255 = pneg %p249
    %p256 = scmp.eq.s32.totalorder %s21, 1
    %p257 = por %p255, %p256
    %p258 = scmp.ne.s32.totalorder %s250, %s253
    %p259 = scmp.eq.s32.totalorder %s21, 0
    %p260 = por %p258, %p259
    %p261 = scmp.ne.s32.totalorder %s250, %s253
    %p262 = scmp.eq.s32.totalorder %s26, 1
    %p263 = por %p261, %p262
    %p264 = scmp.ne.s32.totalorder %s253, %s254
    %p265 = scmp.eq.s32.totalorder %s26, 0
    %p266 = por %p264, %p265
    %p267 = scmp.ne.s32.totalorder %s253, %s254
    %p268 = scmp.eq.s32.totalorder %s27, 1
    %p269 = por %p267, %p268
    %p271 = scmp.ne.s32.totalorder %s254, %s270
    %p272 = scmp.eq.s32.totalorder %s27, 0
    %p273 = por %p271, %p272
    %s274 = ssub.s32 %s21, %s28
    %p275 = scmp.eq.s32.totalorder %s274, 0
    %s277 = sadd.s32 %s276, 1
    %s278 = scalar_select %p275, %s276, %s277
    %p281 = pneg %p275
    %p282 = scmp.eq.s32.totalorder %s21, 1
    %p283 = por %p281, %p282
    %p284 = scmp.ne.s32.totalorder %s276, %s279
    %p285 = scmp.eq.s32.totalorder %s21, 0
    %p286 = por %p284, %p285
    %p287 = scmp.ne.s32.totalorder %s276, %s279
    %p288 = scmp.eq.s32.totalorder %s26, 1
    %p289 = por %p287, %p288
    %p290 = scmp.ne.s32.totalorder %s279, %s280
    %p291 = scmp.eq.s32.totalorder %s26, 0
    %p292 = por %p290, %p291
    %p293 = scmp.ne.s32.totalorder %s279, %s280
    %p294 = scmp.eq.s32.totalorder %s27, 1
    %p295 = por %p293, %p294
    %p297 = scmp.ne.s32.totalorder %s280, %s296
    %p298 = scmp.eq.s32.totalorder %s27, 0
    %p299 = por %p297, %p298
    %s300 = ssub.s32 %s21, %s28
    %p301 = scmp.eq.s32.totalorder %s300, 0
    %s303 = sadd.s32 %s302, 1
    %s304 = scalar_select %p301, %s302, %s303
    %p307 = pneg %p301
    %p308 = scmp.eq.s32.totalorder %s21, 1
    %p309 = por %p307, %p308
    %p310 = scmp.ne.s32.totalorder %s302, %s305
    %p311 = scmp.eq.s32.totalorder %s21, 0
    %p312 = por %p310, %p311
    %p313 = scmp.ne.s32.totalorder %s302, %s305
    %p314 = scmp.eq.s32.totalorder %s26, 1
    %p315 = por %p313, %p314
    %p316 = scmp.ne.s32.totalorder %s305, %s306
    %p317 = scmp.eq.s32.totalorder %s26, 0
    %p318 = por %p316, %p317
    %p319 = scmp.ne.s32.totalorder %s305, %s306
    %p320 = scmp.eq.s32.totalorder %s27, 1
    %p321 = por %p319, %p320
    %p323 = scmp.ne.s32.totalorder %s306, %s322
    %p324 = scmp.eq.s32.totalorder %s27, 0
    %p325 = por %p323, %p324
    %s326 = ssub.s32 %s21, %s28
    %p327 = scmp.eq.s32.totalorder %s326, 0
    %s329 = sadd.s32 %s328, 1
    %s330 = scalar_select %p327, %s328, %s329
    %p333 = pneg %p327
    %p334 = scmp.eq.s32.totalorder %s21, 1
    %p335 = por %p333, %p334
    %p336 = scmp.ne.s32.totalorder %s328, %s331
    %p337 = scmp.eq.s32.totalorder %s21, 0
    %p338 = por %p336, %p337
    %p339 = scmp.ne.s32.totalorder %s328, %s331
    %p340 = scmp.eq.s32.totalorder %s26, 1
    %p341 = por %p339, %p340
    %p342 = scmp.ne.s32.totalorder %s331, %s332
    %p343 = scmp.eq.s32.totalorder %s26, 0
    %p344 = por %p342, %p343
    %p345 = scmp.ne.s32.totalorder %s331, %s332
    %p346 = scmp.eq.s32.totalorder %s27, 1
    %p347 = por %p345, %p346
    %p349 = scmp.ne.s32.totalorder %s332, %s348
    %p350 = scmp.eq.s32.totalorder %s27, 0
    %p351 = por %p349, %p350
    %s352 = ssub.s32 %s21, %s28
    %p353 = scmp.eq.s32.totalorder %s352, 0
    %s355 = sadd.s32 %s354, 1
    %s356 = scalar_select %p353, %s354, %s355
    %p359 = pneg %p353
    %p360 = scmp.eq.s32.totalorder %s21, 1
    %p361 = por %p359, %p360
    %p362 = scmp.ne.s32.totalorder %s354, %s357
    %p363 = scmp.eq.s32.totalorder %s21, 0
    %p364 = por %p362, %p363
    %p365 = scmp.ne.s32.totalorder %s354, %s357
    %p366 = scmp.eq.s32.totalorder %s26, 1
    %p367 = por %p365, %p366
    %p368 = scmp.ne.s32.totalorder %s357, %s358
    %p369 = scmp.eq.s32.totalorder %s26, 0
    %p370 = por %p368, %p369
    %p371 = scmp.ne.s32.totalorder %s357, %s358
    %p372 = scmp.eq.s32.totalorder %s27, 1
    %p373 = por %p371, %p372
    %p375 = scmp.ne.s32.totalorder %s358, %s374
    %p376 = scmp.eq.s32.totalorder %s27, 0
    %p377 = por %p375, %p376
    %s378 = ssub.s32 %s21, %s28
    %p379 = scmp.eq.s32.totalorder %s378, 0
    %s381 = sadd.s32 %s380, 1
    %s382 = scalar_select %p379, %s380, %s381
    %p385 = pneg %p379
    %p386 = scmp.eq.s32.totalorder %s21, 1
    %p387 = por %p385, %p386
    %p388 = scmp.ne.s32.totalorder %s380, %s383
    %p389 = scmp.eq.s32.totalorder %s21, 0
    %p390 = por %p388, %p389
    %p391 = scmp.ne.s32.totalorder %s380, %s383
    %p392 = scmp.eq.s32.totalorder %s26, 1
    %p393 = por %p391, %p392
    %p394 = scmp.ne.s32.totalorder %s383, %s384
    %p395 = scmp.eq.s32.totalorder %s26, 0
    %p396 = por %p394, %p395
    %p397 = scmp.ne.s32.totalorder %s383, %s384
    %p398 = scmp.eq.s32.totalorder %s27, 1
    %p399 = por %p397, %p398
    %p401 = scmp.ne.s32.totalorder %s384, %s400
    %p402 = scmp.eq.s32.totalorder %s27, 0
    %p403 = por %p401, %p402
    %s405 = sadd.s32 %s404, 1
    %p408 = scmp.eq.s32.totalorder %s21, 1
    %p409 = scmp.ne.s32.totalorder %s404, %s406
    %p410 = scmp.eq.s32.totalorder %s21, 0
    %p411 = por %p409, %p410
    %p412 = scmp.ne.s32.totalorder %s404, %s406
    %p413 = scmp.eq.s32.totalorder %s26, 1
    %p414 = por %p412, %p413
    %p415 = scmp.ne.s32.totalorder %s406, %s407
    %p416 = scmp.eq.s32.totalorder %s26, 0
    %p417 = por %p415, %p416
    %p418 = scmp.ne.s32.totalorder %s406, %s407
    %p419 = scmp.eq.s32.totalorder %s27, 1
    %p420 = por %p418, %p419
    %p422 = scmp.ne.s32.totalorder %s407, %s421
    %p423 = scmp.eq.s32.totalorder %s27, 0
    %p424 = por %p422, %p423
    %p425 = scmp.le.s32.totalorder 1, %s21
    %p426 = scmp.lt.s32.totalorder %s21, 3
    %p427 = pnand %p425, %p426
    %p428 = pneg %p427
    // Predicated region
    $region9: #{ljp_bert_forward.2} parent=5 // pred_check
      _
    $region10: #{ljp_bert_forward.2} parent=5 // pred_check_branch
      %430 = sbr.rel (%p427) target = $region12
    $region11: #{ljp_bert_forward.2} parent=5 // pred_region
      %s431 = ssub.s32 %s21, 1
      // Predicated region
      $region13: #{ljp_bert_forward.2} parent=11 // pred_check
        %p432 = pneg %p42
      $region14: #{ljp_bert_forward.2} parent=11 // pred_check_branch
        %434 = sbr.rel (%p432) target = $region16
      $region15: #{ljp_bert_forward.2} parent=11 // pred_region
        _
      $region16: #{ljp_bert_forward.2} parent=11 // pred_fallthru
        _
      // Predicated region
      $region17: #{ljp_bert_forward.2} parent=11 // pred_check
        %p435 = pneg %p63
      $region18: #{ljp_bert_forward.2} parent=11 // pred_check_branch
        %437 = sbr.rel (%p435) target = $region20
      $region19: #{ljp_bert_forward.2} parent=11 // pred_region
        _
      $region20: #{ljp_bert_forward.2} parent=11 // pred_fallthru
        _
      // Predicated region
      $region21: #{ljp_bert_forward.2} parent=11 // pred_check
        %p438 = pneg %p84
      $region22: #{ljp_bert_forward.2} parent=11 // pred_check_branch
        %440 = sbr.rel (%p438) target = $region24
      $region23: #{ljp_bert_forward.2} parent=11 // pred_region
        _
      $region24: #{ljp_bert_forward.2} parent=11 // pred_fallthru
        _
    $region12: #{ljp_bert_forward.2} parent=5 // pred_fallthru
      _
    %p441 = scmp.lt.s32.totalorder %s21, 2
    // Predicated region
    $region25: #{ljp_bert_forward.2} parent=5 // pred_check
      %p442 = pneg %p441
    $region26: #{ljp_bert_forward.2} parent=5 // pred_check_branch
      %444 = sbr.rel (%p442) target = $region28
    $region27: #{ljp_bert_forward.2} parent=5 // pred_region
      // Predicated region
      $region29: #{ljp_bert_forward.2} parent=27 // pred_check
        %p445 = pneg %p104
      $region30: #{ljp_bert_forward.2} parent=27 // pred_check_branch
        %447 = sbr.rel (%p445) target = $region32
      $region31: #{ljp_bert_forward.2} parent=27 // pred_region
        %p448 = scmp.lt.s32.totalorder %s21, 1
        %s449 = scalar_select %p448, %s21, 1
        %s450 = smul.addr %s449, 4
        %s451 = smul.addr %s450, 8
        %s452 = scalar_lea.vmem %s3, %s451
      $region32: #{ljp_bert_forward.2} parent=27 // pred_fallthru
        _
      // Predicated region
      $region33: #{ljp_bert_forward.2} parent=27 // pred_check
        %p453 = pneg %p130
      $region34: #{ljp_bert_forward.2} parent=27 // pred_check_branch
        %455 = sbr.rel (%p453) target = $region36
      $region35: #{ljp_bert_forward.2} parent=27 // pred_region
        %p456 = scmp.lt.s32.totalorder %s21, 1
        %s457 = scalar_select %p456, %s21, 1
        %s458 = scalar_lea.vmem %s4, %s457
      $region36: #{ljp_bert_forward.2} parent=27 // pred_fallthru
        _
      // Predicated region
      $region37: #{ljp_bert_forward.2} parent=27 // pred_check
        %p459 = pneg %p156
      $region38: #{ljp_bert_forward.2} parent=27 // pred_check_branch
        %461 = sbr.rel (%p459) target = $region40
      $region39: #{ljp_bert_forward.2} parent=27 // pred_region
        %p462 = scmp.lt.s32.totalorder %s21, 1
        %s463 = scalar_select %p462, %s21, 1
        %s464 = smul.addr %s463, 4
        %s465 = smul.addr %s464, 8
        %s466 = scalar_lea.vmem %s5, %s465
      $region40: #{ljp_bert_forward.2} parent=27 // pred_fallthru
        _
      // Predicated region
      $region41: #{ljp_bert_forward.2} parent=27 // pred_check
        %p467 = pneg %p182
      $region42: #{ljp_bert_forward.2} parent=27 // pred_check_branch
        %469 = sbr.rel (%p467) target = $region44
      $region43: #{ljp_bert_forward.2} parent=27 // pred_region
        %p470 = scmp.lt.s32.totalorder %s21, 1
        %s471 = scalar_select %p470, %s21, 1
        %s472 = scalar_lea.vmem %s6, %s471
      $region44: #{ljp_bert_forward.2} parent=27 // pred_fallthru
        _
      // Predicated region
      $region45: #{ljp_bert_forward.2} parent=27 // pred_check
        %p473 = pneg %p208
      $region46: #{ljp_bert_forward.2} parent=27 // pred_check_branch
        %475 = sbr.rel (%p473) target = $region48
      $region47: #{ljp_bert_forward.2} parent=27 // pred_region
        %p476 = scmp.lt.s32.totalorder %s21, 1
        %s477 = scalar_select %p476, %s21, 1
        %s478 = scalar_lea.vmem %s7, %s477
      $region48: #{ljp_bert_forward.2} parent=27 // pred_fallthru
        _
      // Predicated region
      $region49: #{ljp_bert_forward.2} parent=27 // pred_check
        %p479 = pneg %p234
      $region50: #{ljp_bert_forward.2} parent=27 // pred_check_branch
        %481 = sbr.rel (%p479) target = $region52
      $region51: #{ljp_bert_forward.2} parent=27 // pred_region
        %p482 = scmp.lt.s32.totalorder %s21, 1
        %s483 = scalar_select %p482, %s21, 1
        %s484 = scalar_lea.vmem %s8, %s483
      $region52: #{ljp_bert_forward.2} parent=27 // pred_fallthru
        _
      // Predicated region
      $region53: #{ljp_bert_forward.2} parent=27 // pred_check
        %p485 = pneg %p260
      $region54: #{ljp_bert_forward.2} parent=27 // pred_check_branch
        %487 = sbr.rel (%p485) target = $region56
      $region55: #{ljp_bert_forward.2} parent=27 // pred_region
        %p488 = scmp.lt.s32.totalorder %s21, 1
        %s489 = scalar_select %p488, %s21, 1
        %s490 = smul.addr %s489, 4
        %s491 = smul.addr %s490, 8
        %s492 = scalar_lea.vmem %s9, %s491
      $region56: #{ljp_bert_forward.2} parent=27 // pred_fallthru
        _
      // Predicated region
      $region57: #{ljp_bert_forward.2} parent=27 // pred_check
        %p493 = pneg %p286
      $region58: #{ljp_bert_forward.2} parent=27 // pred_check_branch
        %495 = sbr.rel (%p493) target = $region60
      $region59: #{ljp_bert_forward.2} parent=27 // pred_region
        %p496 = scmp.lt.s32.totalorder %s21, 1
        %s497 = scalar_select %p496, %s21, 1
        %s498 = scalar_lea.vmem %s10, %s497
      $region60: #{ljp_bert_forward.2} parent=27 // pred_fallthru
        _
      // Predicated region
      $region61: #{ljp_bert_forward.2} parent=27 // pred_check
        %p499 = pneg %p312
      $region62: #{ljp_bert_forward.2} parent=27 // pred_check_branch
        %501 = sbr.rel (%p499) target = $region64
      $region63: #{ljp_bert_forward.2} parent=27 // pred_region
        %p502 = scmp.lt.s32.totalorder %s21, 1
        %s503 = scalar_select %p502, %s21, 1
        %s504 = smul.addr %s503, 16
        %s505 = smul.addr %s504, 8
        %s506 = scalar_lea.vmem %s11, %s505
      $region64: #{ljp_bert_forward.2} parent=27 // pred_fallthru
        _
      // Predicated region
      $region65: #{ljp_bert_forward.2} parent=27 // pred_check
        %p507 = pneg %p338
      $region66: #{ljp_bert_forward.2} parent=27 // pred_check_branch
        %509 = sbr.rel (%p507) target = $region68
      $region67: #{ljp_bert_forward.2} parent=27 // pred_region
        %p510 = scmp.lt.s32.totalorder %s21, 1
        %s511 = scalar_select %p510, %s21, 1
        %s512 = scalar_lea.vmem %s12, %s511
      $region68: #{ljp_bert_forward.2} parent=27 // pred_fallthru
        _
      // Predicated region
      $region69: #{ljp_bert_forward.2} parent=27 // pred_check
        %p513 = pneg %p364
      $region70: #{ljp_bert_forward.2} parent=27 // pred_check_branch
        %515 = sbr.rel (%p513) target = $region72
      $region71: #{ljp_bert_forward.2} parent=27 // pred_region
        %p516 = scmp.lt.s32.totalorder %s21, 1
        %s517 = scalar_select %p516, %s21, 1
        %s518 = scalar_lea.vmem %s13, %s517
      $region72: #{ljp_bert_forward.2} parent=27 // pred_fallthru
        _
      // Predicated region
      $region73: #{ljp_bert_forward.2} parent=27 // pred_check
        %p519 = pneg %p390
      $region74: #{ljp_bert_forward.2} parent=27 // pred_check_branch
        %521 = sbr.rel (%p519) target = $region76
      $region75: #{ljp_bert_forward.2} parent=27 // pred_region
        %p522 = scmp.lt.s32.totalorder %s21, 1
        %s523 = scalar_select %p522, %s21, 1
        %s524 = scalar_lea.vmem %s14, %s523
      $region76: #{ljp_bert_forward.2} parent=27 // pred_fallthru
        _
    $region28: #{ljp_bert_forward.2} parent=5 // pred_fallthru
      _
    %p525 = scmp.le.s32.totalorder 1, %s21
    %p526 = scmp.lt.s32.totalorder %s21, 3
    %p527 = pnand %p525, %p526
    %p528 = pneg %p527
    // Predicated region
    $region77: #{ljp_bert_forward.2} parent=5 // pred_check
      _
    $region78: #{ljp_bert_forward.2} parent=5 // pred_check_branch
      %530 = sbr.rel (%p527) target = $region80
    $region79: #{ljp_bert_forward.2} parent=5 // pred_region
      %s531 = ssub.s32 %s21, 1
      %p532 = pneg %p42
      %p533 = pneg %p39
      %p534 = pneg %p63
      %p535 = pneg %p60
      %p536 = pneg %p84
      %p537 = pneg %p81
      %p538 = scmp.lt.s32.totalorder %s26, 1
      %s539 = scalar_select %p538, %s26, 1
      %s540 = smul.addr %s539, 4
      %s541 = smul.addr %s540, 8
      %s542 = scalar_lea.vmem %s3, %s541
      %p543 = pneg %p110
      %p544 = pneg %p107
      %p545 = scmp.lt.s32.totalorder %s26, 1
      %s546 = scalar_select %p545, %s26, 1
      %s547 = scalar_lea.vmem %s4, %s546
      %p548 = pneg %p136
      %p549 = pneg %p133
      %p550 = scmp.lt.s32.totalorder %s26, 1
      %s551 = scalar_select %p550, %s26, 1
      %s552 = smul.addr %s551, 4
      %s553 = smul.addr %s552, 8
      %s554 = scalar_lea.vmem %s5, %s553
      %p555 = pneg %p162
      %p556 = pneg %p159
      %p557 = scmp.lt.s32.totalorder %s26, 1
      %s558 = scalar_select %p557, %s26, 1
      %s559 = scalar_lea.vmem %s6, %s558
      %p560 = pneg %p188
      %p561 = pneg %p185
      %p562 = scmp.lt.s32.totalorder %s26, 1
      %s563 = scalar_select %p562, %s26, 1
      %s564 = scalar_lea.vmem %s7, %s563
      %p565 = pneg %p214
      %p566 = pneg %p211
      %p567 = scmp.lt.s32.totalorder %s26, 1
      %s568 = scalar_select %p567, %s26, 1
      %s569 = scalar_lea.vmem %s8, %s568
      %p570 = pneg %p240
      %p571 = pneg %p237
      %p572 = scmp.lt.s32.totalorder %s26, 1
      %s573 = scalar_select %p572, %s26, 1
      %s574 = smul.addr %s573, 4
      %s575 = smul.addr %s574, 8
      %s576 = scalar_lea.vmem %s9, %s575
      %p577 = pneg %p266
      %p578 = pneg %p263
      %p579 = scmp.lt.s32.totalorder %s26, 1
      %s580 = scalar_select %p579, %s26, 1
      %s581 = scalar_lea.vmem %s10, %s580
      %p582 = pneg %p292
      %p583 = pneg %p289
      %p584 = scmp.lt.s32.totalorder %s26, 1
      %s585 = scalar_select %p584, %s26, 1
      %s586 = smul.addr %s585, 16
      %s587 = smul.addr %s586, 8
      %s588 = scalar_lea.vmem %s11, %s587
      %p589 = pneg %p318
      %p590 = pneg %p315
      %p591 = scmp.lt.s32.totalorder %s26, 1
      %s592 = scalar_select %p591, %s26, 1
      %s593 = scalar_lea.vmem %s12, %s592
      %p594 = pneg %p344
      %p595 = pneg %p341
      %p596 = scmp.lt.s32.totalorder %s26, 1
      %s597 = scalar_select %p596, %s26, 1
      %s598 = scalar_lea.vmem %s13, %s597
      %p599 = pneg %p370
      %p600 = pneg %p367
      %p601 = scmp.lt.s32.totalorder %s26, 1
      %s602 = scalar_select %p601, %s26, 1
      %s603 = scalar_lea.vmem %s14, %s602
      %p604 = pneg %p396
      %p605 = pneg %p393
      %p606 = pneg %p417
      %p607 = pneg %p414
      %p608 = scmp.lt.s32.totalorder %s26, 1
      %s609 = scalar_select %p608, %s26, 1
      %s610 = smul.addr %s609, 4
      %s611 = smul.addr %s610, 8
      %s612 = scalar_lea.vmem %s3, %s611
      %p613 = scmp.lt.s32.totalorder %s26, 1
      %s614 = scalar_select %p613, %s26, 1
      %s615 = scalar_lea.vmem %s4, %s614
      %p616 = scmp.lt.s32.totalorder %s26, 1
      %s617 = scalar_select %p616, %s26, 1
      %s618 = smul.addr %s617, 4
      %s619 = smul.addr %s618, 8
      %s620 = scalar_lea.vmem %s5, %s619
      %p621 = scmp.lt.s32.totalorder %s26, 1
      %s622 = scalar_select %p621, %s26, 1
      %s623 = scalar_lea.vmem %s6, %s622
      %p624 = scmp.lt.s32.totalorder %s26, 1
      %s625 = scalar_select %p624, %s26, 1
      %s626 = scalar_lea.vmem %s7, %s625
      %p627 = scmp.lt.s32.totalorder %s26, 1
      %s628 = scalar_select %p627, %s26, 1
      %s629 = scalar_lea.vmem %s8, %s628
      %p630 = scmp.lt.s32.totalorder %s26, 1
      %s631 = scalar_select %p630, %s26, 1
      %s632 = smul.addr %s631, 4
      %s633 = smul.addr %s632, 8
      %s634 = scalar_lea.vmem %s9, %s633
      %p635 = scmp.lt.s32.totalorder %s26, 1
      %s636 = scalar_select %p635, %s26, 1
      %s637 = scalar_lea.vmem %s10, %s636
      %p638 = scmp.lt.s32.totalorder %s26, 1
      %s639 = scalar_select %p638, %s26, 1
      %s640 = smul.addr %s639, 16
      %s641 = smul.addr %s640, 8
      %s642 = scalar_lea.vmem %s11, %s641
      %p643 = scmp.lt.s32.totalorder %s26, 1
      %s644 = scalar_select %p643, %s26, 1
      %s645 = scalar_lea.vmem %s12, %s644
      %p646 = scmp.lt.s32.totalorder %s26, 1
      %s647 = scalar_select %p646, %s26, 1
      %s648 = scalar_lea.vmem %s13, %s647
      %p649 = scmp.lt.s32.totalorder %s26, 1
      %s650 = scalar_select %p649, %s26, 1
      %s651 = scalar_lea.vmem %s14, %s650
      %p652 = scmp.eq.s32.totalorder %s26, 0
      // Predicated region
      $region81: #{ljp_bert_forward.2} parent=79 // pred_check
        %p653 = pneg %p652
      $region82: #{ljp_bert_forward.2} parent=79 // pred_check_branch
        %655 = sbr.rel (%p653) target = $region84
      $region83: #{ljp_bert_forward.2} parent=79 // pred_region
        %v656 = vld [vmem:[%s0] sm:$0xff]
        %v657 = vld [vmem:[%s0 + $0x8] sm:$0xff]
        %v658 = vld [vmem:[%s1] sm:$0x1]
        %v659 = vld [vmem:[%s2] sm:$0x1]
        %vm660 = vcmask 261120
        %v661 = vsel %vm660, %v656, 0.0
        %662 = vadd.xlane.f32.xlu0 %v661
        %v663 = vpop.xlane.xlu0 %662
        %v664 = vsel %vm660, %v657, 0.0
        %665 = vadd.xlane.f32.xlu0 %v664
        %v666 = vpop.xlane.xlu0 %665
        %v667 = vrcp.pop 32.0
        %v668 = vmul.f32 32.0, %v667
        %v669 = vsub.f32 1.0, %v668
        %v670 = vmul.f32 %v667, %v669
        %v671 = vadd.f32 %v667, %v670
        %vm672 = vweird.f32 %v667
        %v673 = vsel %vm672, %v667, %v671
        %v674 = vmul.f32 %v663, %v673
        %v675 = vmul.f32 %v666, %v673
        %v676 = vsub.f32 %v656, %v674
        %v677 = vsub.f32 %v657, %v675
        %v678 = vmul.f32 %v676, %v676
        %v679 = vmul.f32 %v677, %v677
        %v680 = vsel %vm660, %v678, 0.0
        %681 = vadd.xlane.f32.xlu0 %v680
        %v682 = vpop.xlane.xlu0 %681
        %v683 = vsel %vm660, %v679, 0.0
        %684 = vadd.xlane.f32.xlu0 %v683
        %v685 = vpop.xlane.xlu0 %684
        %v686 = vmul.f32 %v682, %v673
        %v687 = vmul.f32 %v685, %v673
        %v688 = vadd.f32 %v686, 1e-12
        %v689 = vadd.f32 %v687, 1e-12
        %v690 = vrsqrt.pop %v688
        %v691 = vmul.f32 %v690, %v688
        %v692 = vmul.f32 %v691, %v690
        %v693 = vmul.f32 0.5, %v692
        %v694 = vsub.f32 1.5, %v693
        %v695 = vmul.f32 %v690, %v694
        %vm696 = vweird.f32 %v688
        %vm697 = vweird.f32 %v690
        %vm698 = vmor %vm696, %vm697
        %v699 = vsel %vm698, %v690, %v695
        %v700 = vrsqrt.pop %v689
        %v701 = vmul.f32 %v700, %v689
        %v702 = vmul.f32 %v701, %v700
        %v703 = vmul.f32 0.5, %v702
        %v704 = vsub.f32 1.5, %v703
        %v705 = vmul.f32 %v700, %v704
        %vm706 = vweird.f32 %v689
        %vm707 = vweird.f32 %v700
        %vm708 = vmor %vm706, %vm707
        %v709 = vsel %vm708, %v700, %v705
        %v710 = vmul.f32 %v676, %v699
        %v711 = vmul.f32 %v677, %v709
        %v713 = vperm.slane %v658, 0
        %v715 = vmul.f32 %v710, %v713
        %v716 = vmul.f32 %v711, %v713
        %v718 = vperm.slane %v659, 0
        %v720 = vadd.f32 %v715, %v718
        %v721 = vadd.f32 %v716, %v718
        %722 = vst.msk [vmem:[%s15] sm:$0xff] %vm660, %v720
        %723 = vst.msk [vmem:[%s15 + $0x8] sm:$0xff] %vm660, %v721
      $region84: #{ljp_bert_forward.2} parent=79 // pred_fallthru
        _
      %v724 = vld [vmem:[%s15] sm:$0xff]
      %v725 = vld [vmem:[%s15 + $0x8] sm:$0xff]
      %v726 = vld [vmem:[%s612] sm:$0xff]
      %v727 = vld [vmem:[%s612 + $0x8] sm:$0xff]
      %v728 = vld [vmem:[%s612 + $0x10] sm:$0xff]
      %v729 = vld [vmem:[%s612 + $0x18] sm:$0xff]
      %v730 = vld [vmem:[%s615] sm:$0x1]
      %v732 = vperm.slane %v730, 0
      %vm734 = vcmask 261120
      %v736 = vsel %vm734, %v724, 0
      %v739 = vsel %vm734, %v725, 0
      %741 = vmatpush.msra.mxu0 0.0
      %742 = vmatpush.msra.mxu0 0.0
      %743 = vmatpush.msra.mxu0 0.0
      %744 = vmatpush.msra.mxu0 0.0
      %745 = vmatpush.msra.mxu0 0.0
      %746 = vmatpush.msra.mxu0 0.0
      %747 = vmatpush.msra.mxu0 0.0
      %748 = vmatpush.msra.mxu0 0.0
      %749 = vmatpush.msra.mxu0 0.0
      %750 = vmatpush.msra.mxu0 0.0
      %751 = vmatpush.msra.mxu0 0.0
      %752 = vmatpush.msra.mxu0 0.0
      %753 = vmatpush.msra.mxu0 %v729
      %754 = vmatpush.msra.mxu0 %v728
      %755 = vmatpush.msra.mxu0 %v727
      %756 = vmatpush.msra.mxu0 %v726
      %757 = vmatmul.f32.gmra.mxu0 %v736
      %v758 = vpop.f32.mrf.mxu0
      %v759 = vadd.f32 %v732, %v758
      %760 = vmatmul.f32.gmra.mxu0 %v739
      %v761 = vpop.f32.mrf.mxu0
      %v762 = vadd.f32 %v732, %v761
      %763 = vdwg.mxu0
      %v764 = vmul.f32 %v759, 0.25
      %v765 = vmul.f32 %v762, 0.25
      %767 = vrot.lane.b32.xlu0 %v759, 96
      %v768 = vpop.permute.xlu0 %767
      %vm769 = vcmask 130048
      %v771 = vsel %vm769, %v764, 0
      %v773 = vsel %vm769, %v768, 0
      %775 = vmatpush.xpose.msra.mxu0 0.0
      %776 = vmatpush.xpose.msra.mxu0 0.0
      %777 = vmatpush.xpose.msra.mxu0 0.0
      %778 = vmatpush.xpose.msra.mxu0 0.0
      %779 = vmatpush.xpose.msra.mxu0 0.0
      %780 = vmatpush.xpose.msra.mxu0 0.0
      %781 = vmatpush.xpose.msra.mxu0 0.0
      %782 = vmatpush.xpose.msra.mxu0 0.0
      %783 = vmatpush.xpose.msra.mxu0 0.0
      %784 = vmatpush.xpose.msra.mxu0 0.0
      %785 = vmatpush.xpose.msra.mxu0 0.0
      %786 = vmatpush.xpose.msra.mxu0 0.0
      %787 = vmatpush.xpose.msra.mxu0 0.0
      %788 = vmatpush.xpose.msra.mxu0 0.0
      %789 = vmatpush.xpose.msra.mxu0 0.0
      %790 = vmatpush.xpose.msra.mxu0 %v773
      %791 = vmatmul.f32.gmra.mxu0 %v771
      %v792 = vpop.f32.mrf.mxu0
      %v793 = vadd.f32 0.0, %v792
      %794 = vdwg.mxu0
      %vm795 = vcmask 64512
      %v796 = vsel %vm795, %v793, -inf
      %797 = vmax.xlane.f32.xlu0 %v796
      %v798 = vpop.xlane.xlu0 %797
      %v799 = vsub.f32 %v793, %v798
      %v800 = vmul.f32 %v799, 1.442695
      %v801 = vpow.pop %v800
      %v802 = vsel %vm795, %v801, 0.0
      %803 = vadd.xlane.f32.xlu0 %v802
      %v804 = vpop.xlane.xlu0 %803
      %v805 = vrcp.pop %v804
      %v806 = vmul.f32 %v801, %v805
      %807 = vrot.lane.b32.xlu0 %v759, 64
      %v808 = vpop.permute.xlu0 %807
      %v811 = vsel %vm795, %v806, 0
      %813 = vmatpush.msra.mxu0 0.0
      %814 = vmatpush.msra.mxu0 0.0
      %815 = vmatpush.msra.mxu0 0.0
      %816 = vmatpush.msra.mxu0 0.0
      %817 = vmatpush.msra.mxu0 0.0
      %818 = vmatpush.msra.mxu0 0.0
      %819 = vmatpush.msra.mxu0 0.0
      %820 = vmatpush.msra.mxu0 0.0
      %821 = vmatpush.msra.mxu0 0.0
      %822 = vmatpush.msra.mxu0 0.0
      %823 = vmatpush.msra.mxu0 0.0
      %824 = vmatpush.msra.mxu0 0.0
      %825 = vmatpush.msra.mxu0 0.0
      %826 = vmatpush.msra.mxu0 0.0
      %827 = vmatpush.msra.mxu0 0.0
      %828 = vmatpush.msra.mxu0 %v808
      %829 = vmatmul.f32.gmra.mxu0 %v811
      %v830 = vpop.f32.mrf.mxu0
      %v831 = vadd.f32 0.0, %v830
      %832 = vdwg.mxu0
      %833 = vst.msk [vmem:[#allocation2] sm:$0xff] %vm769, %v831
      %834 = vrot.lane.b32.xlu0 %v764, 112
      %v835 = vpop.permute.xlu0 %834
      %836 = vrot.lane.b32.xlu0 %v759, 80
      %v837 = vpop.permute.xlu0 %836
      %v838 = vsel %vm769, %v835, 0
      %v840 = vsel %vm769, %v837, 0
      %842 = vmatpush.xpose.msra.mxu0 0.0
      %843 = vmatpush.xpose.msra.mxu0 0.0
      %844 = vmatpush.xpose.msra.mxu0 0.0
      %845 = vmatpush.xpose.msra.mxu0 0.0
      %846 = vmatpush.xpose.msra.mxu0 0.0
      %847 = vmatpush.xpose.msra.mxu0 0.0
      %848 = vmatpush.xpose.msra.mxu0 0.0
      %849 = vmatpush.xpose.msra.mxu0 0.0
      %850 = vmatpush.xpose.msra.mxu0 0.0
      %851 = vmatpush.xpose.msra.mxu0 0.0
      %852 = vmatpush.xpose.msra.mxu0 0.0
      %853 = vmatpush.xpose.msra.mxu0 0.0
      %854 = vmatpush.xpose.msra.mxu0 0.0
      %855 = vmatpush.xpose.msra.mxu0 0.0
      %856 = vmatpush.xpose.msra.mxu0 0.0
      %857 = vmatpush.xpose.msra.mxu0 %v840
      %858 = vmatmul.f32.gmra.mxu0 %v838
      %v859 = vpop.f32.mrf.mxu0
      %v860 = vadd.f32 0.0, %v859
      %861 = vdwg.mxu0
      %v862 = vsel %vm795, %v860, -inf
      %863 = vmax.xlane.f32.xlu0 %v862
      %v864 = vpop.xlane.xlu0 %863
      %v865 = vsub.f32 %v860, %v864
      %v866 = vmul.f32 %v865, 1.442695
      %v867 = vpow.pop %v866
      %v868 = vsel %vm795, %v867, 0.0
      %869 = vadd.xlane.f32.xlu0 %v868
      %v870 = vpop.xlane.xlu0 %869
      %v871 = vrcp.pop %v870
      %v872 = vmul.f32 %v867, %v871
      %873 = vrot.lane.b32.xlu0 %v759, 48
      %v874 = vpop.permute.xlu0 %873
      %v877 = vsel %vm795, %v872, 0
      %879 = vmatpush.msra.mxu0 0.0
      %880 = vmatpush.msra.mxu0 0.0
      %881 = vmatpush.msra.mxu0 0.0
      %882 = vmatpush.msra.mxu0 0.0
      %883 = vmatpush.msra.mxu0 0.0
      %884 = vmatpush.msra.mxu0 0.0
      %885 = vmatpush.msra.mxu0 0.0
      %886 = vmatpush.msra.mxu0 0.0
      %887 = vmatpush.msra.mxu0 0.0
      %888 = vmatpush.msra.mxu0 0.0
      %889 = vmatpush.msra.mxu0 0.0
      %890 = vmatpush.msra.mxu0 0.0
      %891 = vmatpush.msra.mxu0 0.0
      %892 = vmatpush.msra.mxu0 0.0
      %893 = vmatpush.msra.mxu0 0.0
      %894 = vmatpush.msra.mxu0 %v874
      %895 = vmatmul.f32.gmra.mxu0 %v877
      %v896 = vpop.f32.mrf.mxu0
      %v897 = vadd.f32 0.0, %v896
      %898 = vdwg.mxu0
      %900 = vrot.lane.b32.xlu0 %v897, 16
      %v901 = vpop.permute.xlu0 %900
      %vm903 = vcmask 261248
      %904 = vst.msk [vmem:[#allocation2] sm:$0xff] %vm903, %v901
      %906 = vrot.lane.b32.xlu0 %v762, 96
      %v907 = vpop.permute.xlu0 %906
      %v909 = vsel %vm769, %v765, 0
      %v911 = vsel %vm769, %v907, 0
      %913 = vmatpush.xpose.msra.mxu0 0.0
      %914 = vmatpush.xpose.msra.mxu0 0.0
      %915 = vmatpush.xpose.msra.mxu0 0.0
      %916 = vmatpush.xpose.msra.mxu0 0.0
      %917 = vmatpush.xpose.msra.mxu0 0.0
      %918 = vmatpush.xpose.msra.mxu0 0.0
      %919 = vmatpush.xpose.msra.mxu0 0.0
      %920 = vmatpush.xpose.msra.mxu0 0.0
      %921 = vmatpush.xpose.msra.mxu0 0.0
      %922 = vmatpush.xpose.msra.mxu0 0.0
      %923 = vmatpush.xpose.msra.mxu0 0.0
      %924 = vmatpush.xpose.msra.mxu0 0.0
      %925 = vmatpush.xpose.msra.mxu0 0.0
      %926 = vmatpush.xpose.msra.mxu0 0.0
      %927 = vmatpush.xpose.msra.mxu0 0.0
      %928 = vmatpush.xpose.msra.mxu0 %v911
      %929 = vmatmul.f32.gmra.mxu0 %v909
      %v930 = vpop.f32.mrf.mxu0
      %v931 = vadd.f32 0.0, %v930
      %932 = vdwg.mxu0
      %v933 = vsel %vm795, %v931, -inf
      %934 = vmax.xlane.f32.xlu0 %v933
      %v935 = vpop.xlane.xlu0 %934
      %v936 = vsub.f32 %v931, %v935
      %v937 = vmul.f32 %v936, 1.442695
      %v938 = vpow.pop %v937
      %v939 = vsel %vm795, %v938, 0.0
      %940 = vadd.xlane.f32.xlu0 %v939
      %v941 = vpop.xlane.xlu0 %940
      %v942 = vrcp.pop %v941
      %v943 = vmul.f32 %v938, %v942
      %944 = vrot.lane.b32.xlu0 %v762, 64
      %v945 = vpop.permute.xlu0 %944
      %v948 = vsel %vm795, %v943, 0
      %950 = vmatpush.msra.mxu0 0.0
      %951 = vmatpush.msra.mxu0 0.0
      %952 = vmatpush.msra.mxu0 0.0
      %953 = vmatpush.msra.mxu0 0.0
      %954 = vmatpush.msra.mxu0 0.0
      %955 = vmatpush.msra.mxu0 0.0
      %956 = vmatpush.msra.mxu0 0.0
      %957 = vmatpush.msra.mxu0 0.0
      %958 = vmatpush.msra.mxu0 0.0
      %959 = vmatpush.msra.mxu0 0.0
      %960 = vmatpush.msra.mxu0 0.0
      %961 = vmatpush.msra.mxu0 0.0
      %962 = vmatpush.msra.mxu0 0.0
      %963 = vmatpush.msra.mxu0 0.0
      %964 = vmatpush.msra.mxu0 0.0
      %965 = vmatpush.msra.mxu0 %v945
      %966 = vmatmul.f32.gmra.mxu0 %v948
      %v967 = vpop.f32.mrf.mxu0
      %v968 = vadd.f32 0.0, %v967
      %969 = vdwg.mxu0
      %970 = vst.msk [vmem:[#allocation2 + $0x8] sm:$0xff] %vm769, %v968
      %971 = vrot.lane.b32.xlu0 %v765, 112
      %v972 = vpop.permute.xlu0 %971
      %973 = vrot.lane.b32.xlu0 %v762, 80
      %v974 = vpop.permute.xlu0 %973
      %v975 = vsel %vm769, %v972, 0
      %v977 = vsel %vm769, %v974, 0
      %979 = vmatpush.xpose.msra.mxu0 0.0
      %980 = vmatpush.xpose.msra.mxu0 0.0
      %981 = vmatpush.xpose.msra.mxu0 0.0
      %982 = vmatpush.xpose.msra.mxu0 0.0
      %983 = vmatpush.xpose.msra.mxu0 0.0
      %984 = vmatpush.xpose.msra.mxu0 0.0
      %985 = vmatpush.xpose.msra.mxu0 0.0
      %986 = vmatpush.xpose.msra.mxu0 0.0
      %987 = vmatpush.xpose.msra.mxu0 0.0
      %988 = vmatpush.xpose.msra.mxu0 0.0
      %989 = vmatpush.xpose.msra.mxu0 0.0
      %990 = vmatpush.xpose.msra.mxu0 0.0
      %991 = vmatpush.xpose.msra.mxu0 0.0
      %992 = vmatpush.xpose.msra.mxu0 0.0
      %993 = vmatpush.xpose.msra.mxu0 0.0
      %994 = vmatpush.xpose.msra.mxu0 %v977
      %995 = vmatmul.f32.gmra.mxu0 %v975
      %v996 = vpop.f32.mrf.mxu0
      %v997 = vadd.f32 0.0, %v996
      %998 = vdwg.mxu0
      %v999 = vsel %vm795, %v997, -inf
      %1000 = vmax.xlane.f32.xlu0 %v999
      %v1001 = vpop.xlane.xlu0 %1000
      %v1002 = vsub.f32 %v997, %v1001
      %v1003 = vmul.f32 %v1002, 1.442695
      %v1004 = vpow.pop %v1003
      %v1005 = vsel %vm795, %v1004, 0.0
      %1006 = vadd.xlane.f32.xlu0 %v1005
      %v1007 = vpop.xlane.xlu0 %1006
      %v1008 = vrcp.pop %v1007
      %v1009 = vmul.f32 %v1004, %v1008
      %1010 = vrot.lane.b32.xlu0 %v762, 48
      %v1011 = vpop.permute.xlu0 %1010
      %v1014 = vsel %vm795, %v1009, 0
      %1016 = vmatpush.msra.mxu0 0.0
      %1017 = vmatpush.msra.mxu0 0.0
      %1018 = vmatpush.msra.mxu0 0.0
      %1019 = vmatpush.msra.mxu0 0.0
      %1020 = vmatpush.msra.mxu0 0.0
      %1021 = vmatpush.msra.mxu0 0.0
      %1022 = vmatpush.msra.mxu0 0.0
      %1023 = vmatpush.msra.mxu0 0.0
      %1024 = vmatpush.msra.mxu0 0.0
      %1025 = vmatpush.msra.mxu0 0.0
      %1026 = vmatpush.msra.mxu0 0.0
      %1027 = vmatpush.msra.mxu0 0.0
      %1028 = vmatpush.msra.mxu0 0.0
      %1029 = vmatpush.msra.mxu0 0.0
      %1030 = vmatpush.msra.mxu0 0.0
      %1031 = vmatpush.msra.mxu0 %v1011
      %1032 = vmatmul.f32.gmra.mxu0 %v1014
      %v1033 = vpop.f32.mrf.mxu0
      %v1034 = vadd.f32 0.0, %v1033
      %1035 = vdwg.mxu0
      %1037 = vrot.lane.b32.xlu0 %v1034, 16
      %v1038 = vpop.permute.xlu0 %1037
      %1040 = vst.msk [vmem:[#allocation2 + $0x8] sm:$0xff] %vm903, %v1038
      %v1041 = vld [vmem:[#allocation2] sm:$0xff]
      %v1042 = vld [vmem:[#allocation2 + $0x8] sm:$0xff]
      %v1043 = vld [vmem:[%s620] sm:$0xff]
      %v1044 = vld [vmem:[%s620 + $0x8] sm:$0xff]
      %v1045 = vld [vmem:[%s620 + $0x10] sm:$0xff]
      %v1046 = vld [vmem:[%s620 + $0x18] sm:$0xff]
      %v1047 = vld [vmem:[%s623] sm:$0x1]
      %v1049 = vperm.slane %v1047, 0
      %v1052 = vsel %vm734, %v1041, 0
      %v1055 = vsel %vm734, %v1042, 0
      %1057 = vmatpush.msra.mxu0 0.0
      %1058 = vmatpush.msra.mxu0 0.0
      %1059 = vmatpush.msra.mxu0 0.0
      %1060 = vmatpush.msra.mxu0 0.0
      %1061 = vmatpush.msra.mxu0 0.0
      %1062 = vmatpush.msra.mxu0 0.0
      %1063 = vmatpush.msra.mxu0 0.0
      %1064 = vmatpush.msra.mxu0 0.0
      %1065 = vmatpush.msra.mxu0 0.0
      %1066 = vmatpush.msra.mxu0 0.0
      %1067 = vmatpush.msra.mxu0 0.0
      %1068 = vmatpush.msra.mxu0 0.0
      %1069 = vmatpush.msra.mxu0 %v1046
      %1070 = vmatpush.msra.mxu0 %v1045
      %1071 = vmatpush.msra.mxu0 %v1044
      %1072 = vmatpush.msra.mxu0 %v1043
      %1073 = vmatmul.f32.gmra.mxu0 %v1052
      %v1074 = vpop.f32.mrf.mxu0
      %v1075 = vadd.f32 %v1049, %v1074
      %1076 = vmatmul.f32.gmra.mxu0 %v1055
      %v1077 = vpop.f32.mrf.mxu0
      %v1078 = vadd.f32 %v1049, %v1077
      %1079 = vdwg.mxu0
      %v1080 = vadd.f32 %v1075, %v724
      %v1081 = vadd.f32 %v1078, %v725
      %v1082 = vld [vmem:[%s626] sm:$0x1]
      %v1083 = vld [vmem:[%s629] sm:$0x1]
      %v1084 = vsel %vm734, %v1080, 0.0
      %1085 = vadd.xlane.f32.xlu0 %v1084
      %v1086 = vpop.xlane.xlu0 %1085
      %v1087 = vsel %vm734, %v1081, 0.0
      %1088 = vadd.xlane.f32.xlu0 %v1087
      %v1089 = vpop.xlane.xlu0 %1088
      %v1090 = vrcp.pop 32.0
      %v1091 = vmul.f32 32.0, %v1090
      %v1092 = vsub.f32 1.0, %v1091
      %v1093 = vmul.f32 %v1090, %v1092
      %v1094 = vadd.f32 %v1090, %v1093
      %vm1095 = vweird.f32 %v1090
      %v1096 = vsel %vm1095, %v1090, %v1094
      %v1097 = vmul.f32 %v1086, %v1096
      %v1098 = vmul.f32 %v1089, %v1096
      %v1099 = vsub.f32 %v1080, %v1097
      %v1100 = vsub.f32 %v1081, %v1098
      %v1101 = vmul.f32 %v1099, %v1099
      %v1102 = vmul.f32 %v1100, %v1100
      %v1103 = vsel %vm734, %v1101, 0.0
      %1104 = vadd.xlane.f32.xlu0 %v1103
      %v1105 = vpop.xlane.xlu0 %1104
      %v1106 = vsel %vm734, %v1102, 0.0
      %1107 = vadd.xlane.f32.xlu0 %v1106
      %v1108 = vpop.xlane.xlu0 %1107
      %v1109 = vmul.f32 %v1105, %v1096
      %v1110 = vmul.f32 %v1108, %v1096
      %v1111 = vadd.f32 %v1109, 1e-12
      %v1112 = vadd.f32 %v1110, 1e-12
      %v1113 = vrsqrt.pop %v1111
      %v1114 = vmul.f32 %v1113, %v1111
      %v1115 = vmul.f32 %v1114, %v1113
      %v1116 = vmul.f32 0.5, %v1115
      %v1117 = vsub.f32 1.5, %v1116
      %v1118 = vmul.f32 %v1113, %v1117
      %vm1119 = vweird.f32 %v1111
      %vm1120 = vweird.f32 %v1113
      %vm1121 = vmor %vm1119, %vm1120
      %v1122 = vsel %vm1121, %v1113, %v1118
      %v1123 = vrsqrt.pop %v1112
      %v1124 = vmul.f32 %v1123, %v1112
      %v1125 = vmul.f32 %v1124, %v1123
      %v1126 = vmul.f32 0.5, %v1125
      %v1127 = vsub.f32 1.5, %v1126
      %v1128 = vmul.f32 %v1123, %v1127
      %vm1129 = vweird.f32 %v1112
      %vm1130 = vweird.f32 %v1123
      %vm1131 = vmor %vm1129, %vm1130
      %v1132 = vsel %vm1131, %v1123, %v1128
      %v1133 = vmul.f32 %v1099, %v1122
      %v1134 = vmul.f32 %v1100, %v1132
      %v1136 = vperm.slane %v1082, 0
      %v1138 = vmul.f32 %v1133, %v1136
      %v1139 = vmul.f32 %v1134, %v1136
      %v1141 = vperm.slane %v1083, 0
      %v1143 = vadd.f32 %v1138, %v1141
      %v1144 = vadd.f32 %v1139, %v1141
      %v1145 = vld [vmem:[%s634] sm:$0xff]
      %v1146 = vld [vmem:[%s634 + $0x8] sm:$0xff]
      %v1147 = vld [vmem:[%s634 + $0x10] sm:$0xff]
      %v1148 = vld [vmem:[%s634 + $0x18] sm:$0xff]
      %v1149 = vld [vmem:[%s637] sm:$0x1]
      %v1151 = vperm.slane %v1149, 0
      %v1154 = vsel %vm734, %v1143, 0
      %v1157 = vsel %vm734, %v1144, 0
      %1159 = vmatpush.msra.mxu0 0.0
      %1160 = vmatpush.msra.mxu0 0.0
      %1161 = vmatpush.msra.mxu0 0.0
      %1162 = vmatpush.msra.mxu0 0.0
      %1163 = vmatpush.msra.mxu0 0.0
      %1164 = vmatpush.msra.mxu0 0.0
      %1165 = vmatpush.msra.mxu0 0.0
      %1166 = vmatpush.msra.mxu0 0.0
      %1167 = vmatpush.msra.mxu0 0.0
      %1168 = vmatpush.msra.mxu0 0.0
      %1169 = vmatpush.msra.mxu0 0.0
      %1170 = vmatpush.msra.mxu0 0.0
      %1171 = vmatpush.msra.mxu0 %v1148
      %1172 = vmatpush.msra.mxu0 %v1147
      %1173 = vmatpush.msra.mxu0 %v1146
      %1174 = vmatpush.msra.mxu0 %v1145
      %1175 = vmatmul.f32.gmra.mxu0 %v1154
      %v1176 = vpop.f32.mrf.mxu0
      %v1177 = vadd.f32 %v1151, %v1176
      %1178 = vmatmul.f32.gmra.mxu0 %v1157
      %v1179 = vpop.f32.mrf.mxu0
      %v1180 = vadd.f32 %v1151, %v1179
      %1181 = vdwg.mxu0
      %v1182 = vmul.f32 %v1177, 0.5
      %v1183 = vmul.f32 %v1180, 0.5
      %v1184 = vmul.f32 %v1177, 0.044715
      %v1185 = vmul.f32 %v1180, 0.044715
      %v1186 = vmul.f32 %v1184, %v1177
      %v1187 = vmul.f32 %v1185, %v1180
      %v1188 = vmul.f32 %v1186, %v1177
      %v1189 = vmul.f32 %v1187, %v1180
      %v1190 = vadd.f32 %v1177, %v1188
      %v1191 = vadd.f32 %v1180, %v1189
      %v1192 = vmul.f32 %v1190, 0.7978846
      %v1193 = vmul.f32 %v1191, 0.7978846
      %v1194 = vtanh.pop %v1192
      %v1195 = vtanh.pop %v1193
      %v1196 = vadd.f32 %v1194, 1.0
      %v1197 = vadd.f32 %v1195, 1.0
      %v1198 = vmul.f32 %v1182, %v1196
      %v1199 = vmul.f32 %v1183, %v1197
      %v1200 = vld [vmem:[%s642] sm:$0xff]
      %v1201 = vld [vmem:[%s642 + $0x8] sm:$0xff]
      %v1202 = vld [vmem:[%s642 + $0x10] sm:$0xff]
      %v1203 = vld [vmem:[%s642 + $0x18] sm:$0xff]
      %v1204 = vld [vmem:[%s642 + $0x20] sm:$0xff]
      %v1205 = vld [vmem:[%s642 + $0x28] sm:$0xff]
      %v1206 = vld [vmem:[%s642 + $0x30] sm:$0xff]
      %v1207 = vld [vmem:[%s642 + $0x38] sm:$0xff]
      %v1208 = vld [vmem:[%s642 + $0x40] sm:$0xff]
      %v1209 = vld [vmem:[%s642 + $0x48] sm:$0xff]
      %v1210 = vld [vmem:[%s642 + $0x50] sm:$0xff]
      %v1211 = vld [vmem:[%s642 + $0x58] sm:$0xff]
      %v1212 = vld [vmem:[%s642 + $0x60] sm:$0xff]
      %v1213 = vld [vmem:[%s642 + $0x68] sm:$0xff]
      %v1214 = vld [vmem:[%s642 + $0x70] sm:$0xff]
      %v1215 = vld [vmem:[%s642 + $0x78] sm:$0xff]
      %v1216 = vld [vmem:[%s645] sm:$0x1]
      %v1218 = vperm.slane %v1216, 0
      %1220 = vmatpush.msra.mxu0 %v1215
      %1221 = vmatpush.msra.mxu0 %v1214
      %1222 = vmatpush.msra.mxu0 %v1213
      %1223 = vmatpush.msra.mxu0 %v1212
      %1224 = vmatpush.msra.mxu0 %v1211
      %1225 = vmatpush.msra.mxu0 %v1210
      %1226 = vmatpush.msra.mxu0 %v1209
      %1227 = vmatpush.msra.mxu0 %v1208
      %1228 = vmatpush.msra.mxu0 %v1207
      %1229 = vmatpush.msra.mxu0 %v1206
      %1230 = vmatpush.msra.mxu0 %v1205
      %1231 = vmatpush.msra.mxu0 %v1204
      %1232 = vmatpush.msra.mxu0 %v1203
      %1233 = vmatpush.msra.mxu0 %v1202
      %1234 = vmatpush.msra.mxu0 %v1201
      %1235 = vmatpush.msra.mxu0 %v1200
      %1236 = vmatmul.f32.gmra.mxu0 %v1198
      %v1237 = vpop.f32.mrf.mxu0
      %v1238 = vadd.f32 %v1218, %v1237
      %1239 = vmatmul.f32.gmra.mxu0 %v1199
      %v1240 = vpop.f32.mrf.mxu0
      %v1241 = vadd.f32 %v1218, %v1240
      %1242 = vdwg.mxu0
      %v1243 = vadd.f32 %v1238, %v1143
      %v1244 = vadd.f32 %v1241, %v1144
      %v1245 = vld [vmem:[%s648] sm:$0x1]
      %v1246 = vld [vmem:[%s651] sm:$0x1]
      %v1247 = vsel %vm734, %v1243, 0.0
      %1248 = vadd.xlane.f32.xlu0 %v1247
      %v1249 = vpop.xlane.xlu0 %1248
      %v1250 = vsel %vm734, %v1244, 0.0
      %1251 = vadd.xlane.f32.xlu0 %v1250
      %v1252 = vpop.xlane.xlu0 %1251
      %v1253 = vmul.f32 %v1249, %v1096
      %v1254 = vmul.f32 %v1252, %v1096
      %v1255 = vsub.f32 %v1243, %v1253
      %v1256 = vsub.f32 %v1244, %v1254
      %v1257 = vmul.f32 %v1255, %v1255
      %v1258 = vmul.f32 %v1256, %v1256
      %v1259 = vsel %vm734, %v1257, 0.0
      %1260 = vadd.xlane.f32.xlu0 %v1259
      %v1261 = vpop.xlane.xlu0 %1260
      %v1262 = vsel %vm734, %v1258, 0.0
      %1263 = vadd.xlane.f32.xlu0 %v1262
      %v1264 = vpop.xlane.xlu0 %1263
      %v1265 = vmul.f32 %v1261, %v1096
      %v1266 = vmul.f32 %v1264, %v1096
      %v1267 = vadd.f32 %v1265, 1e-12
      %v1268 = vadd.f32 %v1266, 1e-12
      %v1269 = vrsqrt.pop %v1267
      %v1270 = vmul.f32 %v1269, %v1267
      %v1271 = vmul.f32 %v1270, %v1269
      %v1272 = vmul.f32 0.5, %v1271
      %v1273 = vsub.f32 1.5, %v1272
      %v1274 = vmul.f32 %v1269, %v1273
      %vm1275 = vweird.f32 %v1267
      %vm1276 = vweird.f32 %v1269
      %vm1277 = vmor %vm1275, %vm1276
      %v1278 = vsel %vm1277, %v1269, %v1274
      %v1279 = vrsqrt.pop %v1268
      %v1280 = vmul.f32 %v1279, %v1268
      %v1281 = vmul.f32 %v1280, %v1279
      %v1282 = vmul.f32 0.5, %v1281
      %v1283 = vsub.f32 1.5, %v1282
      %v1284 = vmul.f32 %v1279, %v1283
      %vm1285 = vweird.f32 %v1268
      %vm1286 = vweird.f32 %v1279
      %vm1287 = vmor %vm1285, %vm1286
      %v1288 = vsel %vm1287, %v1279, %v1284
      %v1289 = vmul.f32 %v1255, %v1278
      %v1290 = vmul.f32 %v1256, %v1288
      %v1292 = vperm.slane %v1245, 0
      %v1294 = vmul.f32 %v1289, %v1292
      %v1295 = vmul.f32 %v1290, %v1292
      %v1297 = vperm.slane %v1246, 0
      %v1299 = vadd.f32 %v1294, %v1297
      %v1300 = vadd.f32 %v1295, %v1297
      %1301 = vst.msk [vmem:[%s15] sm:$0xff] %vm734, %v1299
      %1302 = vst.msk [vmem:[%s15 + $0x8] sm:$0xff] %vm734, %v1300
      // Predicated region
      $region85: #{ljp_bert_forward.2} parent=79 // pred_check
        %p1303 = pneg %p414
      $region86: #{ljp_bert_forward.2} parent=79 // pred_check_branch
        %1305 = sbr.rel (%p1303) target = $region88
      $region87: #{ljp_bert_forward.2} parent=79 // pred_region
        _
      $region88: #{ljp_bert_forward.2} parent=79 // pred_fallthru
        _
      // Predicated region
      $region89: #{ljp_bert_forward.2} parent=79 // pred_check
        %p1306 = pneg %p414
      $region90: #{ljp_bert_forward.2} parent=79 // pred_check_branch
        %1308 = sbr.rel (%p1306) target = $region92
      $region91: #{ljp_bert_forward.2} parent=79 // pred_region
        _
      $region92: #{ljp_bert_forward.2} parent=79 // pred_fallthru
        _
    $region80: #{ljp_bert_forward.2} parent=5 // pred_fallthru
      _
    %p1309 = scmp.le.s32.totalorder 2, %s21
    // Predicated region
    $region93: #{ljp_bert_forward.2} parent=5 // pred_check
      %p1310 = pneg %p1309
    $region94: #{ljp_bert_forward.2} parent=5 // pred_check_branch
      %1312 = sbr.rel (%p1310) target = $region96
    $region95: #{ljp_bert_forward.2} parent=5 // pred_region
      %s1313 = ssub.s32 %s21, 2
    $region96: #{ljp_bert_forward.2} parent=5 // pred_fallthru
      _
  $region6: #{ljp_bert_forward.2} parent=0 // loop_footer
    %s25 = sadd.s32 1, %s21
  $region7: #{ljp_bert_forward.2} parent=0 // loop_footer_branch
    %20 = sbr.rel target = $region3
  $region8: #{ljp_bert_forward.2} parent=0 // loop_exit
    _

// kernel: ljp_bert_forward.3
$region0: #{ljp_bert_forward.3}
  #allocation0 [shape = 'u32[]', space=smem, size = 0x4, offset = 0x4, fixed_abs, tag = 'smem constant byte address 0x4 - core index']
  #allocation1 [shape = 'u32[72,128]{1,0:T(1,128)}', space=vmem, size = 0x9000, scoped, tag = 'internal scratch']
  %s0 = inlined_call_operand.vmem [shape: f32[2,32], index: 0, kind: input, shape index: {}]
  %s1 = inlined_call_operand.vmem [shape: f32[32,32], index: 1, kind: input, shape index: {}]
  %s2 = inlined_call_operand.vmem [shape: f32[1,32], index: 2, kind: input, shape index: {}]
  %s3 = inlined_call_operand.vmem [shape: f32[32,512], index: 3, kind: input, shape index: {}]
  %s4 = inlined_call_operand.vmem [shape: f32[1,512], index: 4, kind: input, shape index: {}]
  %s5 = inlined_call_operand.vmem [shape: f32[32,384], index: 5, kind: input, shape index: {}]
  %s6 = inlined_call_operand.vmem [shape: f32[1,384], index: 6, kind: input, shape index: {}]
  %s7 = inlined_call_operand.vmem [shape: s32[2,256], index: 7, kind: input, shape index: {}]
  %s8 = inlined_call_operand.vmem [shape: s32[2,192], index: 8, kind: input, shape index: {}]
  %s9 = inlined_call_operand.vmem [shape: f32[2,512], index: 9, kind: output, shape index: {0}]
  %s10 = inlined_call_operand.vmem [shape: f32[2,384], index: 10, kind: output, shape index: {1}]
  %s11 = inlined_call_operand.hbm [shape: f32[1,1], index: 11, kind: output, shape index: {2}]
  %12 = xla_tuple %s9, %s10, %s11
  %s13 = sld [smem:[#allocation0]]
  $region62: #{ljp_bert_forward.3} parent=0
    _
  %s15 = ssub.s32 1, %s13
  %s16 = scalar_select 0, %s15, %s13
  $region1: #{ljp_bert_forward.3} parent=0
    #allocation2 [shape = 'u8[512]{0}', space=vmem, size = 0x400, scoped, tag = 'output window, operand 2, single buffered']
    #allocation3 [shape = 's32[1]{0}', space=sflag, size = 0x4, scoped, tag = 'scoped memory for ljp_bert_forward.3']
    %17 = vsyncpa [#allocation3], 0
    // Predicated region
    $region2: #{ljp_bert_forward.3} parent=1 // pred_check
      _
    $region3: #{ljp_bert_forward.3} parent=1 // pred_check_branch
      %19 = sbr.rel (0) target = $region5
    $region4: #{ljp_bert_forward.3} parent=1 // pred_region
      _
    $region5: #{ljp_bert_forward.3} parent=1 // pred_fallthru
      _
    // Predicated region
    $region6: #{ljp_bert_forward.3} parent=1 // pred_check
      _
    $region7: #{ljp_bert_forward.3} parent=1 // pred_check_branch
      %21 = sbr.rel (0) target = $region9
    $region8: #{ljp_bert_forward.3} parent=1 // pred_region
      _
    $region9: #{ljp_bert_forward.3} parent=1 // pred_fallthru
      _
    // Predicated region
    $region10: #{ljp_bert_forward.3} parent=1 // pred_check
      _
    $region11: #{ljp_bert_forward.3} parent=1 // pred_check_branch
      %23 = sbr.rel (0) target = $region13
    $region12: #{ljp_bert_forward.3} parent=1 // pred_region
      _
    $region13: #{ljp_bert_forward.3} parent=1 // pred_fallthru
      _
    // Predicated region
    $region14: #{ljp_bert_forward.3} parent=1 // pred_check
      _
    $region15: #{ljp_bert_forward.3} parent=1 // pred_check_branch
      %25 = sbr.rel (0) target = $region17
    $region16: #{ljp_bert_forward.3} parent=1 // pred_region
      _
    $region17: #{ljp_bert_forward.3} parent=1 // pred_fallthru
      _
    // Predicated region
    $region18: #{ljp_bert_forward.3} parent=1 // pred_check
      _
    $region19: #{ljp_bert_forward.3} parent=1 // pred_check_branch
      %27 = sbr.rel (0) target = $region21
    $region20: #{ljp_bert_forward.3} parent=1 // pred_region
      _
    $region21: #{ljp_bert_forward.3} parent=1 // pred_fallthru
      _
    // Predicated region
    $region22: #{ljp_bert_forward.3} parent=1 // pred_check
      _
    $region23: #{ljp_bert_forward.3} parent=1 // pred_check_branch
      %29 = sbr.rel (0) target = $region25
    $region24: #{ljp_bert_forward.3} parent=1 // pred_region
      _
    $region25: #{ljp_bert_forward.3} parent=1 // pred_fallthru
      _
    // Predicated region
    $region26: #{ljp_bert_forward.3} parent=1 // pred_check
      _
    $region27: #{ljp_bert_forward.3} parent=1 // pred_check_branch
      %31 = sbr.rel (0) target = $region29
    $region28: #{ljp_bert_forward.3} parent=1 // pred_region
      _
    $region29: #{ljp_bert_forward.3} parent=1 // pred_fallthru
      _
    // Predicated region
    $region30: #{ljp_bert_forward.3} parent=1 // pred_check
      _
    $region31: #{ljp_bert_forward.3} parent=1 // pred_check_branch
      %33 = sbr.rel (0) target = $region33
    $region32: #{ljp_bert_forward.3} parent=1 // pred_region
      _
    $region33: #{ljp_bert_forward.3} parent=1 // pred_fallthru
      _
    // Predicated region
    $region34: #{ljp_bert_forward.3} parent=1 // pred_check
      _
    $region35: #{ljp_bert_forward.3} parent=1 // pred_check_branch
      %35 = sbr.rel (0) target = $region37
    $region36: #{ljp_bert_forward.3} parent=1 // pred_region
      _
    $region37: #{ljp_bert_forward.3} parent=1 // pred_fallthru
      _
    %v36 = vld [vmem:[%s0] sm:$0x3]
    %v37 = vld [vmem:[%s1] sm:$0xff]
    %v38 = vld [vmem:[%s1 + $0x8] sm:$0xff]
    %v39 = vld [vmem:[%s1 + $0x10] sm:$0xff]
    %v40 = vld [vmem:[%s1 + $0x18] sm:$0xff]
    %v41 = vld [vmem:[%s2] sm:$0x1]
    %v43 = vperm.slane %v41, 0
    %vm45 = vcmask 261120
    %v47 = vsel %vm45, %v36, 0
    %49 = vmatpush.msra.mxu0 0.0
    %50 = vmatpush.msra.mxu0 0.0
    %51 = vmatpush.msra.mxu0 0.0
    %52 = vmatpush.msra.mxu0 0.0
    %53 = vmatpush.msra.mxu0 0.0
    %54 = vmatpush.msra.mxu0 0.0
    %55 = vmatpush.msra.mxu0 0.0
    %56 = vmatpush.msra.mxu0 0.0
    %57 = vmatpush.msra.mxu0 0.0
    %58 = vmatpush.msra.mxu0 0.0
    %59 = vmatpush.msra.mxu0 0.0
    %60 = vmatpush.msra.mxu0 0.0
    %61 = vmatpush.msra.mxu0 %v40
    %62 = vmatpush.msra.mxu0 %v39
    %63 = vmatpush.msra.mxu0 %v38
    %64 = vmatpush.msra.mxu0 %v37
    %65 = vmatmul.f32.gmra.mxu0 %v47
    %v66 = vpop.f32.mrf.mxu0
    %v67 = vadd.f32 %v43, %v66
    %68 = vdwg.mxu0
    %v69 = vtanh.pop %v67
    %v70 = vld [vmem:[%s3] sm:$0xff]
    %v71 = vld [vmem:[%s3 + $0x8] sm:$0xff]
    %v72 = vld [vmem:[%s3 + $0x10] sm:$0xff]
    %v73 = vld [vmem:[%s3 + $0x18] sm:$0xff]
    %v74 = vld [vmem:[%s3 + $0x20] sm:$0xff]
    %v75 = vld [vmem:[%s3 + $0x28] sm:$0xff]
    %v76 = vld [vmem:[%s3 + $0x30] sm:$0xff]
    %v77 = vld [vmem:[%s3 + $0x38] sm:$0xff]
    %v78 = vld [vmem:[%s3 + $0x40] sm:$0xff]
    %v79 = vld [vmem:[%s3 + $0x48] sm:$0xff]
    %v80 = vld [vmem:[%s3 + $0x50] sm:$0xff]
    %v81 = vld [vmem:[%s3 + $0x58] sm:$0xff]
    %v82 = vld [vmem:[%s3 + $0x60] sm:$0xff]
    %v83 = vld [vmem:[%s3 + $0x68] sm:$0xff]
    %v84 = vld [vmem:[%s3 + $0x70] sm:$0xff]
    %v85 = vld [vmem:[%s3 + $0x78] sm:$0xff]
    %v86 = vld [vmem:[%s4] sm:$0xf]
    %v88 = vperm.slane %v86, 0
    %v89 = vperm.slane %v86, 1
    %v90 = vperm.slane %v86, 2
    %v91 = vperm.slane %v86, 3
    %v97 = vsel %vm45, %v69, 0
    %99 = vmatpush.msra.mxu0 0.0
    %100 = vmatpush.msra.mxu0 0.0
    %101 = vmatpush.msra.mxu0 0.0
    %102 = vmatpush.msra.mxu0 0.0
    %103 = vmatpush.msra.mxu0 0.0
    %104 = vmatpush.msra.mxu0 0.0
    %105 = vmatpush.msra.mxu0 0.0
    %106 = vmatpush.msra.mxu0 0.0
    %107 = vmatpush.msra.mxu0 0.0
    %108 = vmatpush.msra.mxu0 0.0
    %109 = vmatpush.msra.mxu0 0.0
    %110 = vmatpush.msra.mxu0 0.0
    %111 = vmatpush.msra.mxu0 %v82
    %112 = vmatpush.msra.mxu0 %v78
    %113 = vmatpush.msra.mxu0 %v74
    %114 = vmatpush.msra.mxu0 %v70
    %115 = vmatmul.f32.gmra.mxu0 %v97
    %v116 = vpop.f32.mrf.mxu0
    %v117 = vadd.f32 %v88, %v116
    %118 = vdwg.mxu0
    %119 = vmatpush.msra.mxu0 0.0
    %120 = vmatpush.msra.mxu0 0.0
    %121 = vmatpush.msra.mxu0 0.0
    %122 = vmatpush.msra.mxu0 0.0
    %123 = vmatpush.msra.mxu0 0.0
    %124 = vmatpush.msra.mxu0 0.0
    %125 = vmatpush.msra.mxu0 0.0
    %126 = vmatpush.msra.mxu0 0.0
    %127 = vmatpush.msra.mxu0 0.0
    %128 = vmatpush.msra.mxu0 0.0
    %129 = vmatpush.msra.mxu0 0.0
    %130 = vmatpush.msra.mxu0 0.0
    %131 = vmatpush.msra.mxu0 %v83
    %132 = vmatpush.msra.mxu0 %v79
    %133 = vmatpush.msra.mxu0 %v75
    %134 = vmatpush.msra.mxu0 %v71
    %135 = vmatmul.f32.gmra.mxu0 %v97
    %v136 = vpop.f32.mrf.mxu0
    %v137 = vadd.f32 %v89, %v136
    %138 = vdwg.mxu0
    %139 = vmatpush.msra.mxu0 0.0
    %140 = vmatpush.msra.mxu0 0.0
    %141 = vmatpush.msra.mxu0 0.0
    %142 = vmatpush.msra.mxu0 0.0
    %143 = vmatpush.msra.mxu0 0.0
    %144 = vmatpush.msra.mxu0 0.0
    %145 = vmatpush.msra.mxu0 0.0
    %146 = vmatpush.msra.mxu0 0.0
    %147 = vmatpush.msra.mxu0 0.0
    %148 = vmatpush.msra.mxu0 0.0
    %149 = vmatpush.msra.mxu0 0.0
    %150 = vmatpush.msra.mxu0 0.0
    %151 = vmatpush.msra.mxu0 %v84
    %152 = vmatpush.msra.mxu0 %v80
    %153 = vmatpush.msra.mxu0 %v76
    %154 = vmatpush.msra.mxu0 %v72
    %155 = vmatmul.f32.gmra.mxu0 %v97
    %v156 = vpop.f32.mrf.mxu0
    %v157 = vadd.f32 %v90, %v156
    %158 = vdwg.mxu0
    %159 = vmatpush.msra.mxu0 0.0
    %160 = vmatpush.msra.mxu0 0.0
    %161 = vmatpush.msra.mxu0 0.0
    %162 = vmatpush.msra.mxu0 0.0
    %163 = vmatpush.msra.mxu0 0.0
    %164 = vmatpush.msra.mxu0 0.0
    %165 = vmatpush.msra.mxu0 0.0
    %166 = vmatpush.msra.mxu0 0.0
    %167 = vmatpush.msra.mxu0 0.0
    %168 = vmatpush.msra.mxu0 0.0
    %169 = vmatpush.msra.mxu0 0.0
    %170 = vmatpush.msra.mxu0 0.0
    %171 = vmatpush.msra.mxu0 %v85
    %172 = vmatpush.msra.mxu0 %v81
    %173 = vmatpush.msra.mxu0 %v77
    %174 = vmatpush.msra.mxu0 %v73
    %175 = vmatmul.f32.gmra.mxu0 %v97
    %v176 = vpop.f32.mrf.mxu0
    %v177 = vadd.f32 %v91, %v176
    %178 = vdwg.mxu0
    %v179 = vld [vmem:[%s5] sm:$0xff]
    %v180 = vld [vmem:[%s5 + $0x8] sm:$0xff]
    %v181 = vld [vmem:[%s5 + $0x10] sm:$0xff]
    %v182 = vld [vmem:[%s5 + $0x18] sm:$0xff]
    %v183 = vld [vmem:[%s5 + $0x20] sm:$0xff]
    %v184 = vld [vmem:[%s5 + $0x28] sm:$0xff]
    %v185 = vld [vmem:[%s5 + $0x30] sm:$0xff]
    %v186 = vld [vmem:[%s5 + $0x38] sm:$0xff]
    %v187 = vld [vmem:[%s5 + $0x40] sm:$0xff]
    %v188 = vld [vmem:[%s5 + $0x48] sm:$0xff]
    %v189 = vld [vmem:[%s5 + $0x50] sm:$0xff]
    %v190 = vld [vmem:[%s5 + $0x58] sm:$0xff]
    %v191 = vld [vmem:[%s6] sm:$0x7]
    %v193 = vperm.slane %v191, 0
    %v194 = vperm.slane %v191, 1
    %v195 = vperm.slane %v191, 2
    %199 = vmatpush.msra.mxu0 0.0
    %200 = vmatpush.msra.mxu0 0.0
    %201 = vmatpush.msra.mxu0 0.0
    %202 = vmatpush.msra.mxu0 0.0
    %203 = vmatpush.msra.mxu0 0.0
    %204 = vmatpush.msra.mxu0 0.0
    %205 = vmatpush.msra.mxu0 0.0
    %206 = vmatpush.msra.mxu0 0.0
    %207 = vmatpush.msra.mxu0 0.0
    %208 = vmatpush.msra.mxu0 0.0
    %209 = vmatpush.msra.mxu0 0.0
    %210 = vmatpush.msra.mxu0 0.0
    %211 = vmatpush.msra.mxu0 %v188
    %212 = vmatpush.msra.mxu0 %v185
    %213 = vmatpush.msra.mxu0 %v182
    %214 = vmatpush.msra.mxu0 %v179
    %215 = vmatmul.f32.gmra.mxu0 %v97
    %v216 = vpop.f32.mrf.mxu0
    %v217 = vadd.f32 %v193, %v216
    %218 = vdwg.mxu0
    %219 = vmatpush.msra.mxu0 0.0
    %220 = vmatpush.msra.mxu0 0.0
    %221 = vmatpush.msra.mxu0 0.0
    %222 = vmatpush.msra.mxu0 0.0
    %223 = vmatpush.msra.mxu0 0.0
    %224 = vmatpush.msra.mxu0 0.0
    %225 = vmatpush.msra.mxu0 0.0
    %226 = vmatpush.msra.mxu0 0.0
    %227 = vmatpush.msra.mxu0 0.0
    %228 = vmatpush.msra.mxu0 0.0
    %229 = vmatpush.msra.mxu0 0.0
    %230 = vmatpush.msra.mxu0 0.0
    %231 = vmatpush.msra.mxu0 %v189
    %232 = vmatpush.msra.mxu0 %v186
    %233 = vmatpush.msra.mxu0 %v183
    %234 = vmatpush.msra.mxu0 %v180
    %235 = vmatmul.f32.gmra.mxu0 %v97
    %v236 = vpop.f32.mrf.mxu0
    %v237 = vadd.f32 %v194, %v236
    %238 = vdwg.mxu0
    %239 = vmatpush.msra.mxu0 0.0
    %240 = vmatpush.msra.mxu0 0.0
    %241 = vmatpush.msra.mxu0 0.0
    %242 = vmatpush.msra.mxu0 0.0
    %243 = vmatpush.msra.mxu0 0.0
    %244 = vmatpush.msra.mxu0 0.0
    %245 = vmatpush.msra.mxu0 0.0
    %246 = vmatpush.msra.mxu0 0.0
    %247 = vmatpush.msra.mxu0 0.0
    %248 = vmatpush.msra.mxu0 0.0
    %249 = vmatpush.msra.mxu0 0.0
    %250 = vmatpush.msra.mxu0 0.0
    %251 = vmatpush.msra.mxu0 %v190
    %252 = vmatpush.msra.mxu0 %v187
    %253 = vmatpush.msra.mxu0 %v184
    %254 = vmatpush.msra.mxu0 %v181
    %255 = vmatmul.f32.gmra.mxu0 %v97
    %v256 = vpop.f32.mrf.mxu0
    %v257 = vadd.f32 %v195, %v256
    %258 = vdwg.mxu0
    %v263 = vrot.slane %v137, 6
    %v264 = vrot.slane %v157, 4
    %v265 = vrot.slane %v177, 2
    %vm266 = vcmask 1041408
    %v267 = vsel %vm266, %v117, %v263
    %vm268 = vcmask 1045508
    %v269 = vsel %vm268, %v264, %v265
    %vm270 = vcmask 1043456
    %v271 = vsel %vm270, %v267, %v269
    %273 = vst [vmem:[%s9] sm:$0xff] %v271
    %v277 = vrot.slane %v237, 6
    %v278 = vrot.slane %v257, 4
    %v279 = vsel %vm266, %v217, %v277
    %v280 = vsel %vm270, %v279, %v278
    %282 = vst [vmem:[%s10] sm:$0x3f] %v280
    %v283 = vld [vmem:[%s8] sm:$0xf]
    %284 = vrot.lane.b32.xlu0 %v237, 64
    %v285 = vpop.permute.xlu0 %284
    %286 = vrot.lane.b32.xlu0 %v257, 64
    %v287 = vpop.permute.xlu0 %286
    %vm288 = vcmask 523264
    %v289 = vsel %vm288, %v285, %v287
    %v292 = vmax.f32 %v217, %v289
    %v293 = vmax.f32 %v237, %v287
    %v294 = vsub.f32 %v217, %v292
    %v295 = vsub.f32 %v237, %v293
    %v296 = vmul.f32 %v294, 1.442695
    %v297 = vpow.pop %v296
    %v298 = vmul.f32 %v295, 1.442695
    %v299 = vpow.pop %v298
    %302 = vrot.lane.b32.xlu0 %v292, 64
    %v303 = vpop.permute.xlu0 %302
    %304 = vrot.lane.b32.xlu0 %v293, 64
    %v305 = vpop.permute.xlu0 %304
    %v306 = vsel %vm288, %v303, %v305
    %v309 = vsub.f32 %v237, %v303
    %v310 = vsub.f32 %v257, %v306
    %v311 = vmul.f32 %v309, 1.442695
    %v312 = vpow.pop %v311
    %v313 = vmul.f32 %v310, 1.442695
    %v314 = vpow.pop %v313
    %317 = vrot.lane.b32.xlu0 %v312, 64
    %v318 = vpop.permute.xlu0 %317
    %319 = vrot.lane.b32.xlu0 %v314, 64
    %v320 = vpop.permute.xlu0 %319
    %v321 = vsel %vm288, %v318, %v320
    %v324 = vadd.f32 %v297, %v321
    %v325 = vadd.f32 %v299, %v320
    %v326 = vlog2.pop %v324
    %v327 = vmul.f32 %v326, 0.6931472
    %v328 = vlog2.pop %v325
    %v329 = vmul.f32 %v328, 0.6931472
    %v330 = vadd.f32 %v292, %v327
    %v331 = vadd.f32 %v293, %v329
    %vm332 = vcmp.eq.s32.totalorder %v283, 1
    %v333 = vrot.slane %v257, 6
    %v334 = vsel %vm266, %v237, %v333
    %335 = vrot.lane.b32.xlu0 %v334, 64
    %v336 = vpop.permute.xlu0 %335
    %v337 = vrot.slane %v336, 2
    %v338 = vsel %vm288, %v336, %v337
    %v341 = vsel %vm332, %v338, %v279
    %343 = vst [vmem:[#allocation1] ss:$4 sm:$0xff] %v341
    %v344 = vld.sshfl [vmem:[#allocation1] sm:$0xff pattern:$0x73625140]
    %v345 = vld.sshfl [vmem:[#allocation1 + $0x8] sm:$0xff pattern:$0x73625140]
    %v348 = vsub.f32 %v330, %v344
    %v349 = vsub.f32 %v331, %v345
    %v350 = vlaneseq
    %v351 = vand.u32 %v350, 127
    %v352 = vadd.s32 %v351, 128
    %vm353 = vcmp.lt.s32.totalorder %v351, 183
    %vm354 = vcmp.lt.s32.totalorder %v352, 183
    %v355 = vsel %vm353, %v348, 0.0
    %v356 = vsel %vm354, %v349, 0.0
    %v357 = vsel %vm266, %v355, 0.0
    %vm358 = vcmask 517120
    %v359 = vsel %vm358, %v356, 0.0
    %v360 = vadd.f32 %v357, %v359
    %361 = vadd.xlane.f32.xlu0 %v360
    %v362 = vpop.xlane.xlu0 %361
    %v363 = vrot.slane %v362, 4
    %v364 = vadd.f32 %v362, %v363
    %v365 = vrot.slane %v364, 2
    %v366 = vadd.f32 %v364, %v365
    %v367 = vrot.slane %v366, 1
    %v368 = vadd.f32 %v366, %v367
    %s369 = vtos %v368
    %s370 = smul.f32 %s369, 0.5
    %v371 = vld [vmem:[%s7] sm:$0xf]
    %v372 = vmax.f32 %v117, %v157
    %v373 = vmax.f32 %v137, %v177
    %v374 = vsub.f32 %v117, %v372
    %v375 = vsub.f32 %v137, %v373
    %v376 = vmul.f32 %v374, 1.442695
    %v377 = vpow.pop %v376
    %v378 = vmul.f32 %v375, 1.442695
    %v379 = vpow.pop %v378
    %v380 = vsub.f32 %v157, %v372
    %v381 = vsub.f32 %v177, %v373
    %v382 = vmul.f32 %v380, 1.442695
    %v383 = vpow.pop %v382
    %v384 = vmul.f32 %v381, 1.442695
    %v385 = vpow.pop %v384
    %v386 = vadd.f32 %v377, %v383
    %v387 = vadd.f32 %v379, %v385
    %v388 = vlog2.pop %v386
    %v389 = vmul.f32 %v388, 0.6931472
    %v390 = vlog2.pop %v387
    %v391 = vmul.f32 %v390, 0.6931472
    %v392 = vadd.f32 %v372, %v389
    %v393 = vadd.f32 %v373, %v391
    %vm394 = vcmp.eq.s32.totalorder %v371, 1
    %v395 = vrot.slane %v177, 6
    %v396 = vsel %vm266, %v157, %v395
    %v399 = vsel %vm394, %v396, %v267
    %401 = vst [vmem:[#allocation1] ss:$4 sm:$0xff] %v399
    %v402 = vld.sshfl [vmem:[#allocation1] sm:$0xff pattern:$0x73625140]
    %v403 = vld.sshfl [vmem:[#allocation1 + $0x8] sm:$0xff pattern:$0x73625140]
    %v406 = vsub.f32 %v392, %v402
    %v407 = vsub.f32 %v393, %v403
    %vm408 = vcmp.lt.s32.totalorder %v351, 200
    %vm409 = vcmp.lt.s32.totalorder %v352, 200
    %v410 = vsel %vm408, %v406, 0.0
    %v411 = vsel %vm409, %v407, 0.0
    %v412 = vsel %vm266, %v410, 0.0
    %v413 = vsel %vm266, %v411, 0.0
    %v414 = vadd.f32 %v412, %v413
    %415 = vadd.xlane.f32.xlu0 %v414
    %v416 = vpop.xlane.xlu0 %415
    %v417 = vrot.slane %v416, 4
    %v418 = vadd.f32 %v416, %v417
    %v419 = vrot.slane %v418, 2
    %v420 = vadd.f32 %v418, %v419
    %v421 = vrot.slane %v420, 1
    %v422 = vadd.f32 %v420, %v421
    %s423 = vtos %v422
    %s424 = smul.f32 %s423, 0.5
    %s425 = sadd.f32 %s370, %s424
    %v426 = vstv %s425
    %vm427 = vcmask 0
    %428 = vst.msk [vmem:[#allocation2] sm:$0x1] %vm427, %v426
    // Predicated region
    $region38: #{ljp_bert_forward.3} parent=1 // pred_check
      _
    $region39: #{ljp_bert_forward.3} parent=1 // pred_check_branch
      %430 = sbr.rel (0) target = $region41
    $region40: #{ljp_bert_forward.3} parent=1 // pred_region
      _
    $region41: #{ljp_bert_forward.3} parent=1 // pred_fallthru
      _
    // Predicated region
    $region42: #{ljp_bert_forward.3} parent=1 // pred_check
      _
    $region43: #{ljp_bert_forward.3} parent=1 // pred_check_branch
      %432 = sbr.rel (0) target = $region45
    $region44: #{ljp_bert_forward.3} parent=1 // pred_region
      _
    $region45: #{ljp_bert_forward.3} parent=1 // pred_fallthru
      _
    // Predicated region
    $region46: #{ljp_bert_forward.3} parent=1 // pred_check
      _
    $region47: #{ljp_bert_forward.3} parent=1 // pred_check_branch
      %434 = sbr.rel (0) target = $region49
    $region48: #{ljp_bert_forward.3} parent=1 // pred_region
      %436 = vsyncadd [#allocation3], 0
      %s438 = sshll.u32 [#allocation2], 4
      %s439 = int_to_ptr.vmem [resolvable:$true] %s438
      %s440 = sshll.u32 %s11, 4
      %s441 = int_to_ptr.hbm [resolvable:$true] %s440
      %443 = dma.vmem_to_hbm [thread:$0]  %s439, 16, %s441, [#allocation3]
    $region49: #{ljp_bert_forward.3} parent=1 // pred_fallthru
      _
    // Predicated region
    $region50: #{ljp_bert_forward.3} parent=1 // pred_check
      _
    $region51: #{ljp_bert_forward.3} parent=1 // pred_check_branch
      %445 = sbr.rel (0) target = $region53
    $region52: #{ljp_bert_forward.3} parent=1 // pred_region
      _
    $region53: #{ljp_bert_forward.3} parent=1 // pred_fallthru
      _
    // Predicated region
    $region54: #{ljp_bert_forward.3} parent=1 // pred_check
      _
    $region55: #{ljp_bert_forward.3} parent=1 // pred_check_branch
      %447 = sbr.rel (0) target = $region57
    $region56: #{ljp_bert_forward.3} parent=1 // pred_region
      _
    $region57: #{ljp_bert_forward.3} parent=1 // pred_fallthru
      _
    // Predicated region
    $region58: #{ljp_bert_forward.3} parent=1 // pred_check
      _
    $region59: #{ljp_bert_forward.3} parent=1 // pred_check_branch
      %449 = sbr.rel (0) target = $region61
    $region60: #{ljp_bert_forward.3} parent=1 // pred_region
      %451 = dma.done [#allocation3], 16
    $region61: #{ljp_bert_forward.3} parent=1 // pred_fallthru
      _
    %452 = vsyncpa [#allocation3], 1

</llo_original>
